<compile_context>
chip_gen: v7x
topology: tpu7x:2x2x1
jax: 0.10.0
libtpu: 0.0.40
codegen_flags: <defaults>
</compile_context>

<pallas_src>
import functools

import jax
import jax.numpy as jnp
from jax.experimental import pallas as pl
from jax.experimental.pallas import tpu as pltpu

EPS = 1e-5  # PyTorch InstanceNorm2d default eps


def _conv3x3_fused(x, w_ref, slab_ref, Wp):
    """3x3 conv on a zero-haloed (Cp, Lp) f32 slab as one fused MXU matmul.

    Interior output positions are exact; halo / lane-pad output positions hold
    garbage and are excluded downstream (norm mask matmul / wrapper slice).
    """
    Cp, Lp = x.shape
    tap = 0
    for dy in (-1, 0, 1):
        base = pltpu.roll(x, (-dy * Wp) % Lp, 1) if dy != 0 else x
        for dx in (-1, 0, 1):
            t = pltpu.roll(base, (-dx) % Lp, 1) if dx != 0 else base
            # bf16 straight into the im2col scratch: no f32 concatenate.
            slab_ref[tap * Cp:(tap + 1) * Cp, :] = t.astype(jnp.bfloat16)
            tap += 1
    # (Cp, 9*Cp) @ (9*Cp, Lp) -> (Cp, Lp); bf16 operands, f32 accumulation.
    return jnp.dot(w_ref[...], slab_ref[...], preferred_element_type=jnp.float32)


def _instance_norm(x, ones_ref, inv_hw):
    """InstanceNorm over valid (interior) positions only; sums on the MXU."""
    s1 = jnp.dot(x.astype(jnp.bfloat16), ones_ref[...],
                 preferred_element_type=jnp.float32)          # (Cp, 128), masked sum
    mean = s1[:, :1] * inv_hw                                 # (Cp, 1)
    c = x - mean
    s2 = jnp.dot((c * c).astype(jnp.bfloat16), ones_ref[...],
                 preferred_element_type=jnp.float32)
    var = s2[:, :1] * inv_hw                                  # two-pass: no cancellation
    return c * jax.lax.rsqrt(var + EPS)


def residual_block_kernel(x_ref, w1_ref, w2_ref, valid_ref, ones_ref, o_ref,
                          slab_ref, *, Wp, C, inv_hw):
    x = x_ref[0]                                    # (Cp, Lp) f32, halo already zero
    y = _conv3x3_fused(x, w1_ref, slab_ref, Wp)     # Conv2d (no bias)
    y = _instance_norm(y, ones_ref, inv_hw)         # InstanceNorm2d
    y = jnp.maximum(y, 0.0) * valid_ref[...]        # ReLU + re-zero halo before conv2
    y = _conv3x3_fused(y, w2_ref, slab_ref, Wp)     # Conv2d (no bias)
    y = _instance_norm(y, ones_ref, inv_hw)         # InstanceNorm2d
    o_ref[0] = (x[:C] + y[:C]).astype(o_ref.dtype)  # residual add, unpadded channels


def _fuse_weight(w, Cp):
    """(C, C, 3, 3) OIHW -> (Cp, 9*Cp) bf16, column index = (ky*3+kx)*Cp + i."""
    C = w.shape[0]
    wp = jnp.zeros((Cp, Cp, 3, 3), w.dtype).at[:C, :C].set(w)
    return jnp.transpose(wp, (0, 2, 3, 1)).reshape(Cp, 9 * Cp).astype(jnp.bfloat16)


def _valid_mask(H, W, Lp):
    """(1, Lp) f32: 1.0 at interior positions of the zero-haloed flat layout."""
    Hp, Wp = H + 2, W + 2
    py = jnp.arange(Hp)[:, None]
    px = jnp.arange(Wp)[None, :]
    v = ((py >= 1) & (py <= H) & (px >= 1) & (px <= W)).reshape(-1)
    v = jnp.pad(v, (0, Lp - Hp * Wp)).astype(jnp.float32)
    return v[None, :]


def _compiler_params():
    kwargs = dict(dimension_semantics=("parallel",))
    try:  # generation-aware VMEM budget (64 MiB/TC on v7x vs 128 MiB on v5e/v6e)
        cap = pltpu.get_tpu_info().vmem_capacity_bytes
        kwargs["vmem_limit_bytes"] = int(cap) * 5 // 8
    except Exception:
        pass  # fall back to the compiler default scoped limit
    return pltpu.CompilerParams(**kwargs)


def residual_block(x, w1, w2):
    """x: (N, C, H, W) f32 (NCHW, as in PyTorch); w1, w2: (C, C, 3, 3) f32 (OIHW)."""
    N, C, H, W = x.shape
    Hp, Wp = H + 2, W + 2
    HpWp = Hp * Wp
    Lp = -(-HpWp // 128) * 128              # lane-dense spatial axis
    Cp = -(-C // 16) * 16                   # bf16 vregs pack 16 sublanes

    # Zero halo + channel pad, flatten spatial onto the lane axis, pad lanes.
    xp = jnp.pad(x, ((0, 0), (0, Cp - C), (1, 1), (1, 1))).reshape(N, Cp, HpWp)
    if Lp != HpWp:
        xp = jnp.pad(xp, ((0, 0), (0, 0), (0, Lp - HpWp)))

    w1f = _fuse_weight(w1, Cp)
    w2f = _fuse_weight(w2, Cp)
    valid = _valid_mask(H, W, Lp)                                        # (1, Lp) f32
    ones_col = jnp.broadcast_to(valid.reshape(Lp, 1), (Lp, 128)).astype(jnp.bfloat16)

    kernel = functools.partial(residual_block_kernel, Wp=Wp, C=C, inv_hw=1.0 / (H * W))
    # TODO(synk): for C*H*W large enough to pressure v7x's 64 MiB VMEM, split the
    # spatial axis into row strips (1-row halo) with a two-pass InstanceNorm
    # (stats pass + normalize pass), since the norm needs full-image statistics.
    out = pl.pallas_call(
        kernel,
        out_shape=jax.ShapeDtypeStruct((N, C, Lp), x.dtype),
        grid_spec=pltpu.PrefetchScalarGridSpec(
            num_scalar_prefetch=0,
            grid=(N,),
            in_specs=[
                pl.BlockSpec((1, Cp, Lp), lambda n: (n, 0, 0)),
                pl.BlockSpec((Cp, 9 * Cp), lambda n: (0, 0)),   # resident weights
                pl.BlockSpec((Cp, 9 * Cp), lambda n: (0, 0)),
                pl.BlockSpec((1, Lp), lambda n: (0, 0)),        # resident valid mask
                pl.BlockSpec((Lp, 128), lambda n: (0, 0)),      # resident ones/valid cols
            ],
            out_specs=pl.BlockSpec((1, C, Lp), lambda n: (n, 0, 0)),
            scratch_shapes=[pltpu.VMEM((9 * Cp, Lp), jnp.bfloat16)],   # bf16 im2col slab
        ),
        compiler_params=_compiler_params(),
    )(xp, w1f, w2f, valid, ones_col)

    # Strip the spatial halo / lane padding (channels already unpadded).
    return out[:, :, :HpWp].reshape(N, C, Hp, Wp)[:, :, 1:-1, 1:-1]


def residual_block_ref(x, w1, w2):
    """Pure-JAX reference of the PyTorch forward (NCHW, f32 HIGHEST)."""
    dn = ("NCHW", "OIHW", "NCHW")

    def conv(a, w):
        return jax.lax.conv_general_dilated(
            a, w, (1, 1), "SAME", dimension_numbers=dn,
            precision=jax.lax.Precision.HIGHEST)

    def inorm(a):
        m = a.mean(axis=(2, 3), keepdims=True)
        v = ((a - m) ** 2).mean(axis=(2, 3), keepdims=True)
        return (a - m) / jnp.sqrt(v + EPS)

    y = inorm(conv(x, w1))
    y = jax.nn.relu(y)
    y = inorm(conv(y, w2))
    return x + y


if __name__ == "__main__":
    key = jax.random.PRNGKey(0)
    k1, k2, k3 = jax.random.split(key, 3)

    N, C, H, W = 2, 4, 16, 16
    x = jax.random.normal(k1, (N, C, H, W), jnp.float32)
    fan_in = C * 3 * 3
    w1 = jax.random.normal(k2, (C, C, 3, 3), jnp.float32) / jnp.sqrt(fan_in)
    w2 = jax.random.normal(k3, (C, C, 3, 3), jnp.float32) / jnp.sqrt(fan_in)

    out = jax.block_until_ready(residual_block(x, w1, w2))
    ref = residual_block_ref(x, w1, w2)

    assert out.shape == ref.shape and out.dtype == ref.dtype
    max_err = float(jnp.max(jnp.abs(out - ref)))
    # Intentional precision trade: bf16 MXU operands (convs + norm statistics)
    # vs the f32 HIGHEST reference.
    assert max_err < 3e-2, f"max abs error too large: {max_err}"
    print("KERNEL_OK")
</pallas_src>

<mosaic_0001>
module attributes {stable_mosaic.version = 11 : i64} {
  func.func @residual_block_kernel(%arg0: i32, %arg1: memref<1x16x384xf32, #tpu.memory_space<vmem>>, %arg2: memref<16x144xbf16, #tpu.memory_space<vmem>>, %arg3: memref<16x144xbf16, #tpu.memory_space<vmem>>, %arg4: memref<1x384xf32, #tpu.memory_space<vmem>>, %arg5: memref<384x128xbf16, #tpu.memory_space<vmem>>, %arg6: memref<1x4x384xf32, #tpu.memory_space<vmem>>, %arg7: memref<144x384xbf16, #tpu.memory_space<vmem>>) attributes {dimension_semantics = [#tpu.dimension_semantics<parallel>], iteration_bounds = array<i64: 2>, scalar_prefetch = 0 : i64, scratch_operands = 1 : i64, tpu.core_type = #tpu.core_type<tc>, window_params = [{transform_indices = @transform_0, window_bounds = array<i64: 1, 16, 384>}, {pipeline_mode = #tpu.pipeline_mode<synchronous>, transform_indices = @transform_1, window_bounds = array<i64: 16, 144>}, {pipeline_mode = #tpu.pipeline_mode<synchronous>, transform_indices = @transform_2, window_bounds = array<i64: 16, 144>}, {pipeline_mode = #tpu.pipeline_mode<synchronous>, transform_indices = @transform_3, window_bounds = array<i64: 1, 384>}, {pipeline_mode = #tpu.pipeline_mode<synchronous>, transform_indices = @transform_4, window_bounds = array<i64: 384, 128>}, {transform_indices = @transform_5, window_bounds = array<i64: 1, 4, 384>}]} {
    %c0 = arith.constant 0 : index
    %c0_0 = arith.constant 0 : index
    %c0_1 = arith.constant 0 : index
    %0 = vector.load %arg1[%c0, %c0_0, %c0_1] : memref<1x16x384xf32, #tpu.memory_space<vmem>>, vector<1x16x384xf32>
    %1 = vector.shape_cast %0 : vector<1x16x384xf32> to vector<16x384xf32>
    %c18_i32 = arith.constant 18 : i32
    %2 = tpu.dynamic_rotate %1 by %c18_i32 dim 1 : vector<16x384xf32>, i32 -> vector<16x384xf32>
    %c1_i32 = arith.constant 1 : i32
    %3 = tpu.dynamic_rotate %2 by %c1_i32 dim 1 : vector<16x384xf32>, i32 -> vector<16x384xf32>
    %4 = arith.truncf %3 : vector<16x384xf32> to vector<16x384xbf16>
    %c0_2 = arith.constant 0 : index
    %c0_3 = arith.constant 0 : index
    %5 = vector.load %arg7[%c0_2, %c0_3] : memref<144x384xbf16, #tpu.memory_space<vmem>>, vector<16x384xbf16>
    tpu.vector_store %arg7[%c0_2, %c0_3], %4 {strides = array<i32>} : memref<144x384xbf16, #tpu.memory_space<vmem>>, vector<16x384xbf16>,
    %6 = arith.truncf %2 : vector<16x384xf32> to vector<16x384xbf16>
    %c16 = arith.constant 16 : index
    %c0_4 = arith.constant 0 : index
    %7 = vector.load %arg7[%c16, %c0_4] : memref<144x384xbf16, #tpu.memory_space<vmem>>, vector<16x384xbf16>
    tpu.vector_store %arg7[%c16, %c0_4], %6 {strides = array<i32>} : memref<144x384xbf16, #tpu.memory_space<vmem>>, vector<16x384xbf16>,
    %c383_i32 = arith.constant 383 : i32
    %8 = tpu.dynamic_rotate %2 by %c383_i32 dim 1 : vector<16x384xf32>, i32 -> vector<16x384xf32>
    %9 = arith.truncf %8 : vector<16x384xf32> to vector<16x384xbf16>
    %c32 = arith.constant 32 : index
    %c0_5 = arith.constant 0 : index
    %10 = vector.load %arg7[%c32, %c0_5] : memref<144x384xbf16, #tpu.memory_space<vmem>>, vector<16x384xbf16>
    tpu.vector_store %arg7[%c32, %c0_5], %9 {strides = array<i32>} : memref<144x384xbf16, #tpu.memory_space<vmem>>, vector<16x384xbf16>,
    %c1_i32_6 = arith.constant 1 : i32
    %11 = tpu.dynamic_rotate %1 by %c1_i32_6 dim 1 : vector<16x384xf32>, i32 -> vector<16x384xf32>
    %12 = arith.truncf %11 : vector<16x384xf32> to vector<16x384xbf16>
    %c48 = arith.constant 48 : index
    %c0_7 = arith.constant 0 : index
    %13 = vector.load %arg7[%c48, %c0_7] : memref<144x384xbf16, #tpu.memory_space<vmem>>, vector<16x384xbf16>
    tpu.vector_store %arg7[%c48, %c0_7], %12 {strides = array<i32>} : memref<144x384xbf16, #tpu.memory_space<vmem>>, vector<16x384xbf16>,
    %14 = arith.truncf %1 : vector<16x384xf32> to vector<16x384xbf16>
    %c64 = arith.constant 64 : index
    %c0_8 = arith.constant 0 : index
    %15 = vector.load %arg7[%c64, %c0_8] : memref<144x384xbf16, #tpu.memory_space<vmem>>, vector<16x384xbf16>
    tpu.vector_store %arg7[%c64, %c0_8], %14 {strides = array<i32>} : memref<144x384xbf16, #tpu.memory_space<vmem>>, vector<16x384xbf16>,
    %c383_i32_9 = arith.constant 383 : i32
    %16 = tpu.dynamic_rotate %1 by %c383_i32_9 dim 1 : vector<16x384xf32>, i32 -> vector<16x384xf32>
    %17 = arith.truncf %16 : vector<16x384xf32> to vector<16x384xbf16>
    %c80 = arith.constant 80 : index
    %c0_10 = arith.constant 0 : index
    %18 = vector.load %arg7[%c80, %c0_10] : memref<144x384xbf16, #tpu.memory_space<vmem>>, vector<16x384xbf16>
    tpu.vector_store %arg7[%c80, %c0_10], %17 {strides = array<i32>} : memref<144x384xbf16, #tpu.memory_space<vmem>>, vector<16x384xbf16>,
    %c366_i32 = arith.constant 366 : i32
    %19 = tpu.dynamic_rotate %1 by %c366_i32 dim 1 : vector<16x384xf32>, i32 -> vector<16x384xf32>
    %c1_i32_11 = arith.constant 1 : i32
    %20 = tpu.dynamic_rotate %19 by %c1_i32_11 dim 1 : vector<16x384xf32>, i32 -> vector<16x384xf32>
    %21 = arith.truncf %20 : vector<16x384xf32> to vector<16x384xbf16>
    %c96 = arith.constant 96 : index
    %c0_12 = arith.constant 0 : index
    %22 = vector.load %arg7[%c96, %c0_12] : memref<144x384xbf16, #tpu.memory_space<vmem>>, vector<16x384xbf16>
    tpu.vector_store %arg7[%c96, %c0_12], %21 {strides = array<i32>} : memref<144x384xbf16, #tpu.memory_space<vmem>>, vector<16x384xbf16>,
    %23 = arith.truncf %19 : vector<16x384xf32> to vector<16x384xbf16>
    %c112 = arith.constant 112 : index
    %c0_13 = arith.constant 0 : index
    %24 = vector.load %arg7[%c112, %c0_13] : memref<144x384xbf16, #tpu.memory_space<vmem>>, vector<16x384xbf16>
    tpu.vector_store %arg7[%c112, %c0_13], %23 {strides = array<i32>} : memref<144x384xbf16, #tpu.memory_space<vmem>>, vector<16x384xbf16>,
    %c383_i32_14 = arith.constant 383 : i32
    %25 = tpu.dynamic_rotate %19 by %c383_i32_14 dim 1 : vector<16x384xf32>, i32 -> vector<16x384xf32>
    %26 = arith.truncf %25 : vector<16x384xf32> to vector<16x384xbf16>
    %c128 = arith.constant 128 : index
    %c0_15 = arith.constant 0 : index
    %27 = vector.load %arg7[%c128, %c0_15] : memref<144x384xbf16, #tpu.memory_space<vmem>>, vector<16x384xbf16>
    tpu.vector_store %arg7[%c128, %c0_15], %26 {strides = array<i32>} : memref<144x384xbf16, #tpu.memory_space<vmem>>, vector<16x384xbf16>,
    %c0_16 = arith.constant 0 : index
    %c0_17 = arith.constant 0 : index
    %28 = vector.load %arg2[%c0_16, %c0_17] : memref<16x144xbf16, #tpu.memory_space<vmem>>, vector<16x144xbf16>
    %c0_18 = arith.constant 0 : index
    %c0_19 = arith.constant 0 : index
    %29 = vector.load %arg7[%c0_18, %c0_19] : memref<144x384xbf16, #tpu.memory_space<vmem>>, vector<144x384xbf16>
    %cst = arith.constant dense<0.000000e+00> : vector<16x384xf32>
    %30 = tpu.matmul %28, %29, %cst {dimension_numbers = #tpu.dot_dimension_numbers<[1], [0], [0], [1], [0, 0, 1, 1], [], []>} : vector<16x144xbf16>, vector<144x384xbf16>, vector<16x384xf32> -> vector<16x384xf32>
    %31 = arith.truncf %30 : vector<16x384xf32> to vector<16x384xbf16>
    %c0_20 = arith.constant 0 : index
    %c0_21 = arith.constant 0 : index
    %32 = vector.load %arg5[%c0_20, %c0_21] : memref<384x128xbf16, #tpu.memory_space<vmem>>, vector<384x128xbf16>
    %cst_22 = arith.constant dense<0.000000e+00> : vector<16x128xf32>
    %33 = tpu.matmul %31, %32, %cst_22 {dimension_numbers = #tpu.dot_dimension_numbers<[1], [0], [0], [1], [0, 0, 1, 1], [], []>} : vector<16x384xbf16>, vector<384x128xbf16>, vector<16x128xf32> -> vector<16x128xf32>
    %34 = vector.extract_strided_slice %33 {offsets = [0, 0], sizes = [16, 1], strides = [1, 1]} : vector<16x128xf32> to vector<16x1xf32>
    %cst_23 = arith.constant 3.906250e-03 : f32
    %35 = vector.broadcast %cst_23 : f32 to vector<16x1xf32>
    %36 = arith.mulf %34, %35 : vector<16x1xf32>
    %37 = vector.broadcast %36 : vector<16x1xf32> to vector<16x384xf32>
    %38 = arith.subf %30, %37 : vector<16x384xf32>
    %39 = arith.mulf %38, %38 : vector<16x384xf32>
    %40 = arith.truncf %39 : vector<16x384xf32> to vector<16x384xbf16>
    %c0_24 = arith.constant 0 : index
    %c0_25 = arith.constant 0 : index
    %41 = vector.load %arg5[%c0_24, %c0_25] : memref<384x128xbf16, #tpu.memory_space<vmem>>, vector<384x128xbf16>
    %cst_26 = arith.constant dense<0.000000e+00> : vector<16x128xf32>
    %42 = tpu.matmul %40, %41, %cst_26 {dimension_numbers = #tpu.dot_dimension_numbers<[1], [0], [0], [1], [0, 0, 1, 1], [], []>} : vector<16x384xbf16>, vector<384x128xbf16>, vector<16x128xf32> -> vector<16x128xf32>
    %43 = vector.extract_strided_slice %42 {offsets = [0, 0], sizes = [16, 1], strides = [1, 1]} : vector<16x128xf32> to vector<16x1xf32>
    %cst_27 = arith.constant 3.906250e-03 : f32
    %44 = vector.broadcast %cst_27 : f32 to vector<16x1xf32>
    %45 = arith.mulf %43, %44 : vector<16x1xf32>
    %cst_28 = arith.constant 9.99999974E-6 : f32
    %46 = vector.broadcast %cst_28 : f32 to vector<16x1xf32>
    %47 = arith.addf %45, %46 : vector<16x1xf32>
    %48 = math.rsqrt %47 : vector<16x1xf32>
    %49 = vector.broadcast %48 : vector<16x1xf32> to vector<16x384xf32>
    %50 = arith.mulf %38, %49 : vector<16x384xf32>
    %cst_29 = arith.constant 0.000000e+00 : f32
    %51 = vector.broadcast %cst_29 : f32 to vector<16x384xf32>
    %52 = arith.maximumf %50, %51 : vector<16x384xf32>
    %c0_30 = arith.constant 0 : index
    %c0_31 = arith.constant 0 : index
    %53 = vector.load %arg4[%c0_30, %c0_31] : memref<1x384xf32, #tpu.memory_space<vmem>>, vector<1x384xf32>
    %54 = vector.broadcast %53 : vector<1x384xf32> to vector<16x384xf32>
    %55 = arith.mulf %52, %54 : vector<16x384xf32>
    %c18_i32_32 = arith.constant 18 : i32
    %56 = tpu.dynamic_rotate %55 by %c18_i32_32 dim 1 : vector<16x384xf32>, i32 -> vector<16x384xf32>
    %c1_i32_33 = arith.constant 1 : i32
    %57 = tpu.dynamic_rotate %56 by %c1_i32_33 dim 1 : vector<16x384xf32>, i32 -> vector<16x384xf32>
    %58 = arith.truncf %57 : vector<16x384xf32> to vector<16x384xbf16>
    %c0_34 = arith.constant 0 : index
    %c0_35 = arith.constant 0 : index
    %59 = vector.load %arg7[%c0_34, %c0_35] : memref<144x384xbf16, #tpu.memory_space<vmem>>, vector<16x384xbf16>
    tpu.vector_store %arg7[%c0_34, %c0_35], %58 {strides = array<i32>} : memref<144x384xbf16, #tpu.memory_space<vmem>>, vector<16x384xbf16>,
    %60 = arith.truncf %56 : vector<16x384xf32> to vector<16x384xbf16>
    %c16_36 = arith.constant 16 : index
    %c0_37 = arith.constant 0 : index
    %61 = vector.load %arg7[%c16_36, %c0_37] : memref<144x384xbf16, #tpu.memory_space<vmem>>, vector<16x384xbf16>
    tpu.vector_store %arg7[%c16_36, %c0_37], %60 {strides = array<i32>} : memref<144x384xbf16, #tpu.memory_space<vmem>>, vector<16x384xbf16>,
    %c383_i32_38 = arith.constant 383 : i32
    %62 = tpu.dynamic_rotate %56 by %c383_i32_38 dim 1 : vector<16x384xf32>, i32 -> vector<16x384xf32>
    %63 = arith.truncf %62 : vector<16x384xf32> to vector<16x384xbf16>
    %c32_39 = arith.constant 32 : index
    %c0_40 = arith.constant 0 : index
    %64 = vector.load %arg7[%c32_39, %c0_40] : memref<144x384xbf16, #tpu.memory_space<vmem>>, vector<16x384xbf16>
    tpu.vector_store %arg7[%c32_39, %c0_40], %63 {strides = array<i32>} : memref<144x384xbf16, #tpu.memory_space<vmem>>, vector<16x384xbf16>,
    %c1_i32_41 = arith.constant 1 : i32
    %65 = tpu.dynamic_rotate %55 by %c1_i32_41 dim 1 : vector<16x384xf32>, i32 -> vector<16x384xf32>
    %66 = arith.truncf %65 : vector<16x384xf32> to vector<16x384xbf16>
    %c48_42 = arith.constant 48 : index
    %c0_43 = arith.constant 0 : index
    %67 = vector.load %arg7[%c48_42, %c0_43] : memref<144x384xbf16, #tpu.memory_space<vmem>>, vector<16x384xbf16>
    tpu.vector_store %arg7[%c48_42, %c0_43], %66 {strides = array<i32>} : memref<144x384xbf16, #tpu.memory_space<vmem>>, vector<16x384xbf16>,
    %68 = arith.truncf %55 : vector<16x384xf32> to vector<16x384xbf16>
    %c64_44 = arith.constant 64 : index
    %c0_45 = arith.constant 0 : index
    %69 = vector.load %arg7[%c64_44, %c0_45] : memref<144x384xbf16, #tpu.memory_space<vmem>>, vector<16x384xbf16>
    tpu.vector_store %arg7[%c64_44, %c0_45], %68 {strides = array<i32>} : memref<144x384xbf16, #tpu.memory_space<vmem>>, vector<16x384xbf16>,
    %c383_i32_46 = arith.constant 383 : i32
    %70 = tpu.dynamic_rotate %55 by %c383_i32_46 dim 1 : vector<16x384xf32>, i32 -> vector<16x384xf32>
    %71 = arith.truncf %70 : vector<16x384xf32> to vector<16x384xbf16>
    %c80_47 = arith.constant 80 : index
    %c0_48 = arith.constant 0 : index
    %72 = vector.load %arg7[%c80_47, %c0_48] : memref<144x384xbf16, #tpu.memory_space<vmem>>, vector<16x384xbf16>
    tpu.vector_store %arg7[%c80_47, %c0_48], %71 {strides = array<i32>} : memref<144x384xbf16, #tpu.memory_space<vmem>>, vector<16x384xbf16>,
    %c366_i32_49 = arith.constant 366 : i32
    %73 = tpu.dynamic_rotate %55 by %c366_i32_49 dim 1 : vector<16x384xf32>, i32 -> vector<16x384xf32>
    %c1_i32_50 = arith.constant 1 : i32
    %74 = tpu.dynamic_rotate %73 by %c1_i32_50 dim 1 : vector<16x384xf32>, i32 -> vector<16x384xf32>
    %75 = arith.truncf %74 : vector<16x384xf32> to vector<16x384xbf16>
    %c96_51 = arith.constant 96 : index
    %c0_52 = arith.constant 0 : index
    %76 = vector.load %arg7[%c96_51, %c0_52] : memref<144x384xbf16, #tpu.memory_space<vmem>>, vector<16x384xbf16>
    tpu.vector_store %arg7[%c96_51, %c0_52], %75 {strides = array<i32>} : memref<144x384xbf16, #tpu.memory_space<vmem>>, vector<16x384xbf16>,
    %77 = arith.truncf %73 : vector<16x384xf32> to vector<16x384xbf16>
    %c112_53 = arith.constant 112 : index
    %c0_54 = arith.constant 0 : index
    %78 = vector.load %arg7[%c112_53, %c0_54] : memref<144x384xbf16, #tpu.memory_space<vmem>>, vector<16x384xbf16>
    tpu.vector_store %arg7[%c112_53, %c0_54], %77 {strides = array<i32>} : memref<144x384xbf16, #tpu.memory_space<vmem>>, vector<16x384xbf16>,
    %c383_i32_55 = arith.constant 383 : i32
    %79 = tpu.dynamic_rotate %73 by %c383_i32_55 dim 1 : vector<16x384xf32>, i32 -> vector<16x384xf32>
    %80 = arith.truncf %79 : vector<16x384xf32> to vector<16x384xbf16>
    %c128_56 = arith.constant 128 : index
    %c0_57 = arith.constant 0 : index
    %81 = vector.load %arg7[%c128_56, %c0_57] : memref<144x384xbf16, #tpu.memory_space<vmem>>, vector<16x384xbf16>
    tpu.vector_store %arg7[%c128_56, %c0_57], %80 {strides = array<i32>} : memref<144x384xbf16, #tpu.memory_space<vmem>>, vector<16x384xbf16>,
    %c0_58 = arith.constant 0 : index
    %c0_59 = arith.constant 0 : index
    %82 = vector.load %arg3[%c0_58, %c0_59] : memref<16x144xbf16, #tpu.memory_space<vmem>>, vector<16x144xbf16>
    %c0_60 = arith.constant 0 : index
    %c0_61 = arith.constant 0 : index
    %83 = vector.load %arg7[%c0_60, %c0_61] : memref<144x384xbf16, #tpu.memory_space<vmem>>, vector<144x384xbf16>
    %cst_62 = arith.constant dense<0.000000e+00> : vector<16x384xf32>
    %84 = tpu.matmul %82, %83, %cst_62 {dimension_numbers = #tpu.dot_dimension_numbers<[1], [0], [0], [1], [0, 0, 1, 1], [], []>} : vector<16x144xbf16>, vector<144x384xbf16>, vector<16x384xf32> -> vector<16x384xf32>
    %85 = arith.truncf %84 : vector<16x384xf32> to vector<16x384xbf16>
    %c0_63 = arith.constant 0 : index
    %c0_64 = arith.constant 0 : index
    %86 = vector.load %arg5[%c0_63, %c0_64] : memref<384x128xbf16, #tpu.memory_space<vmem>>, vector<384x128xbf16>
    %cst_65 = arith.constant dense<0.000000e+00> : vector<16x128xf32>
    %87 = tpu.matmul %85, %86, %cst_65 {dimension_numbers = #tpu.dot_dimension_numbers<[1], [0], [0], [1], [0, 0, 1, 1], [], []>} : vector<16x384xbf16>, vector<384x128xbf16>, vector<16x128xf32> -> vector<16x128xf32>
    %88 = vector.extract_strided_slice %87 {offsets = [0, 0], sizes = [16, 1], strides = [1, 1]} : vector<16x128xf32> to vector<16x1xf32>
    %cst_66 = arith.constant 3.906250e-03 : f32
    %89 = vector.broadcast %cst_66 : f32 to vector<16x1xf32>
    %90 = arith.mulf %88, %89 : vector<16x1xf32>
    %91 = vector.broadcast %90 : vector<16x1xf32> to vector<16x384xf32>
    %92 = arith.subf %84, %91 : vector<16x384xf32>
    %93 = arith.mulf %92, %92 : vector<16x384xf32>
    %94 = arith.truncf %93 : vector<16x384xf32> to vector<16x384xbf16>
    %c0_67 = arith.constant 0 : index
    %c0_68 = arith.constant 0 : index
    %95 = vector.load %arg5[%c0_67, %c0_68] : memref<384x128xbf16, #tpu.memory_space<vmem>>, vector<384x128xbf16>
    %cst_69 = arith.constant dense<0.000000e+00> : vector<16x128xf32>
    %96 = tpu.matmul %94, %95, %cst_69 {dimension_numbers = #tpu.dot_dimension_numbers<[1], [0], [0], [1], [0, 0, 1, 1], [], []>} : vector<16x384xbf16>, vector<384x128xbf16>, vector<16x128xf32> -> vector<16x128xf32>
    %97 = vector.extract_strided_slice %96 {offsets = [0, 0], sizes = [16, 1], strides = [1, 1]} : vector<16x128xf32> to vector<16x1xf32>
    %cst_70 = arith.constant 3.906250e-03 : f32
    %98 = vector.broadcast %cst_70 : f32 to vector<16x1xf32>
    %99 = arith.mulf %97, %98 : vector<16x1xf32>
    %cst_71 = arith.constant 9.99999974E-6 : f32
    %100 = vector.broadcast %cst_71 : f32 to vector<16x1xf32>
    %101 = arith.addf %99, %100 : vector<16x1xf32>
    %102 = math.rsqrt %101 : vector<16x1xf32>
    %103 = vector.broadcast %102 : vector<16x1xf32> to vector<16x384xf32>
    %104 = arith.mulf %92, %103 : vector<16x384xf32>
    %105 = vector.extract_strided_slice %1 {offsets = [0, 0], sizes = [4, 384], strides = [1, 1]} : vector<16x384xf32> to vector<4x384xf32>
    %106 = vector.extract_strided_slice %104 {offsets = [0, 0], sizes = [4, 384], strides = [1, 1]} : vector<16x384xf32> to vector<4x384xf32>
    %107 = arith.addf %105, %106 : vector<4x384xf32>
    %c0_72 = arith.constant 0 : index
    %c0_73 = arith.constant 0 : index
    %c0_74 = arith.constant 0 : index
    %108 = vector.load %arg6[%c0_72, %c0_73, %c0_74] : memref<1x4x384xf32, #tpu.memory_space<vmem>>, vector<1x4x384xf32>
    %109 = vector.shape_cast %108 : vector<1x4x384xf32> to vector<4x384xf32>
    %110 = vector.shape_cast %107 : vector<4x384xf32> to vector<1x4x384xf32>
    tpu.vector_store %arg6[%c0_72, %c0_73, %c0_74], %110 {strides = array<i32>} : memref<1x4x384xf32, #tpu.memory_space<vmem>>, vector<1x4x384xf32>,
    return
  }
  func.func @transform_0(%arg0: i32) -> (i32, i32, i32) {
    %c0_i32 = arith.constant 0 : i32
    %c0_i32_0 = arith.constant 0 : i32
    %c0_i32_1 = arith.constant 0 : i32
    return %arg0, %c0_i32, %c0_i32_0 : i32, i32, i32
  }
  func.func @transform_1(%arg0: i32) -> (i32, i32) {
    %c0_i32 = arith.constant 0 : i32
    %c0_i32_0 = arith.constant 0 : i32
    %c0_i32_1 = arith.constant 0 : i32
    return %c0_i32, %c0_i32_0 : i32, i32
  }
  func.func @transform_2(%arg0: i32) -> (i32, i32) {
    %c0_i32 = arith.constant 0 : i32
    %c0_i32_0 = arith.constant 0 : i32
    %c0_i32_1 = arith.constant 0 : i32
    return %c0_i32, %c0_i32_0 : i32, i32
  }
  func.func @transform_3(%arg0: i32) -> (i32, i32) {
    %c0_i32 = arith.constant 0 : i32
    %c0_i32_0 = arith.constant 0 : i32
    %c0_i32_1 = arith.constant 0 : i32
    return %c0_i32, %c0_i32_0 : i32, i32
  }
  func.func @transform_4(%arg0: i32) -> (i32, i32) {
    %c0_i32 = arith.constant 0 : i32
    %c0_i32_0 = arith.constant 0 : i32
    %c0_i32_1 = arith.constant 0 : i32
    return %c0_i32, %c0_i32_0 : i32, i32
  }
  func.func @transform_5(%arg0: i32) -> (i32, i32, i32) {
    %c0_i32 = arith.constant 0 : i32
    %c0_i32_0 = arith.constant 0 : i32
    %c0_i32_1 = arith.constant 0 : i32
    return %arg0, %c0_i32, %c0_i32_0 : i32, i32, i32
  }
}

</mosaic_0001>

<llo_original>
// kernel: tpu_custom_call.1
$region0: #{tpu_custom_call.1}
  #allocation0 [shape = 'u32[]', space=smem, size = 0x4, offset = 0x4, fixed_abs, tag = 'smem constant byte address 0x4 - core index']
  #allocation1 [shape = 'u32[144,128]{1,0:T(1,128)}', space=vmem, size = 0x12000, scoped, tag = 'internal scratch']
  #allocation2 [shape = 'bf16[144,384]{1,0:T(16,128)(2,1)}', space=vmem, size = 0x1b000, scoped, tag = 'scratch operand']
  %s0 = inlined_call_operand.hbm [shape: f32[2,16,384], index: 0, kind: input, shape index: {}]
  %s1 = inlined_call_operand.hbm [shape: bf16[16,144], index: 1, kind: input, shape index: {}]
  %s2 = inlined_call_operand.hbm [shape: bf16[16,144], index: 2, kind: input, shape index: {}]
  %s3 = inlined_call_operand.vmem [shape: f32[1,384], index: 3, kind: input, shape index: {}]
  %s4 = inlined_call_operand.hbm [shape: bf16[384,128], index: 4, kind: input, shape index: {}]
  %s5 = inlined_call_operand.hbm [shape: f32[2,4,384], index: 5, kind: output, shape index: {}]
  %s6 = sld [smem:[#allocation0]]
  $region69: #{tpu_custom_call.1} parent=0
    _
  %s8 = ssub.s32 1, %s6
  %s9 = scalar_select 0, %s8, %s6
  $region1: #{tpu_custom_call.1} parent=0
    #allocation3 [shape = 'u8[49152]{0}', space=vmem, size = 0xc000, scoped, tag = 'input window, operand 0']
    #allocation4 [shape = 's32[2]{0}', space=sflag, size = 0x8, scoped, tag = 'scoped memory for tpu_custom_call.1']
    #allocation5 [shape = 's32[2]{0}', space=sflag, size = 0x8, scoped, tag = 'scoped memory for tpu_custom_call.1']
    #allocation6 [shape = 'u8[8192]{0}', space=vmem, size = 0x2000, scoped, tag = 'input window, operand 1, single buffered']
    #allocation7 [shape = 's32[1]{0}', space=sflag, size = 0x4, scoped, tag = 'scoped memory for tpu_custom_call.1']
    #allocation8 [shape = 'u8[8192]{0}', space=vmem, size = 0x2000, scoped, tag = 'input window, operand 2, single buffered']
    #allocation9 [shape = 'u8[98304]{0}', space=vmem, size = 0x18000, scoped, tag = 'input window, operand 4, single buffered']
    #allocation10 [shape = 's32[1]{0}', space=sflag, size = 0x4, scoped, tag = 'scoped memory for tpu_custom_call.1']
    #allocation11 [shape = 'u8[12288]{0}', space=vmem, size = 0x3000, scoped, tag = 'output window, operand 0']
    %10 = vsyncpa [#allocation4], 0
    %s11 = scalar_lea.sflag [#allocation4], 1
    %12 = vsyncpa %s11, 0
    %13 = vsyncpa [#allocation7], 0
    %14 = vsyncpa [#allocation10], 0
    %15 = vsyncpa [#allocation5], 0
    %s16 = scalar_lea.sflag [#allocation5], 1
    %17 = vsyncpa %s16, 0
    loop: start=0, step=1, limit=4
    $region2: #{tpu_custom_call.1} parent=1 // loop_pre_header
      _
    $region3: #{tpu_custom_call.1} parent=1 // loop_header
      %s19 = sphi 0, %s23
      %p20 = scmp.ge.s32.totalorder %s19, 4
      %s29 = sphi 0, %s31
      %s32 = sphi 0, %s29
      %s33 = sphi 0, %s32
      %s49 = sphi 0, %s33
      %s53 = sphi 0, %s53
      %s55 = sphi 0, %s53
      %s56 = sphi 0, %s55
      %s70 = sphi 0, %s56
      %s74 = sphi 0, %s74
      %s76 = sphi 0, %s74
      %s77 = sphi 0, %s76
      %s91 = sphi 0, %s77
      %s95 = sphi 0, %s95
      %s97 = sphi 0, %s95
      %s98 = sphi 0, %s97
      %s112 = sphi 0, %s98
      %s116 = sphi 0, %s116
      %s118 = sphi 0, %s116
      %s119 = sphi 0, %s118
      %s133 = sphi 0, %s119
      %s139 = sphi 0, %s141
      %s142 = sphi 0, %s139
      %s143 = sphi 0, %s142
      %s159 = sphi 0, %s143
    $region4: #{tpu_custom_call.1} parent=1 // loop_header_branch
      %22 = sbr.rel (%p20) target = $region8
    $region5: #{tpu_custom_call.1} parent=1 // loop_body
      %s24 = ssub.s32 %s19, 1
      %s25 = ssub.s32 %s19, 2
      %s26 = sadd.s32 %s19, 1
      %s27 = ssub.s32 %s19, %s26
      %p28 = scmp.eq.s32.totalorder %s27, 0
      %s30 = sadd.s32 %s29, 1
      %s31 = scalar_select %p28, %s29, %s30
      %p34 = pneg %p28
      %p35 = scmp.eq.s32.totalorder %s19, 1
      %p36 = por %p34, %p35
      %p37 = scmp.ne.s32.totalorder %s29, %s32
      %p38 = scmp.eq.s32.totalorder %s19, 0
      %p39 = por %p37, %p38
      %p40 = scmp.ne.s32.totalorder %s29, %s32
      %p41 = scmp.eq.s32.totalorder %s24, 1
      %p42 = por %p40, %p41
      %p43 = scmp.ne.s32.totalorder %s32, %s33
      %p44 = scmp.eq.s32.totalorder %s24, 0
      %p45 = por %p43, %p44
      %p46 = scmp.ne.s32.totalorder %s32, %s33
      %p47 = scmp.eq.s32.totalorder %s25, 1
      %p48 = por %p46, %p47
      %p50 = scmp.ne.s32.totalorder %s33, %s49
      %p51 = scmp.eq.s32.totalorder %s25, 0
      %p52 = por %p50, %p51
      %s54 = sadd.s32 %s53, 1
      %p57 = scmp.eq.s32.totalorder %s19, 1
      %p58 = scmp.ne.s32.totalorder %s53, %s55
      %p59 = scmp.eq.s32.totalorder %s19, 0
      %p60 = por %p58, %p59
      %p61 = scmp.ne.s32.totalorder %s53, %s55
      %p62 = scmp.eq.s32.totalorder %s24, 1
      %p63 = por %p61, %p62
      %p64 = scmp.ne.s32.totalorder %s55, %s56
      %p65 = scmp.eq.s32.totalorder %s24, 0
      %p66 = por %p64, %p65
      %p67 = scmp.ne.s32.totalorder %s55, %s56
      %p68 = scmp.eq.s32.totalorder %s25, 1
      %p69 = por %p67, %p68
      %p71 = scmp.ne.s32.totalorder %s56, %s70
      %p72 = scmp.eq.s32.totalorder %s25, 0
      %p73 = por %p71, %p72
      %s75 = sadd.s32 %s74, 1
      %p78 = scmp.eq.s32.totalorder %s19, 1
      %p79 = scmp.ne.s32.totalorder %s74, %s76
      %p80 = scmp.eq.s32.totalorder %s19, 0
      %p81 = por %p79, %p80
      %p82 = scmp.ne.s32.totalorder %s74, %s76
      %p83 = scmp.eq.s32.totalorder %s24, 1
      %p84 = por %p82, %p83
      %p85 = scmp.ne.s32.totalorder %s76, %s77
      %p86 = scmp.eq.s32.totalorder %s24, 0
      %p87 = por %p85, %p86
      %p88 = scmp.ne.s32.totalorder %s76, %s77
      %p89 = scmp.eq.s32.totalorder %s25, 1
      %p90 = por %p88, %p89
      %p92 = scmp.ne.s32.totalorder %s77, %s91
      %p93 = scmp.eq.s32.totalorder %s25, 0
      %p94 = por %p92, %p93
      %s96 = sadd.s32 %s95, 1
      %p99 = scmp.eq.s32.totalorder %s19, 1
      %p100 = scmp.ne.s32.totalorder %s95, %s97
      %p101 = scmp.eq.s32.totalorder %s19, 0
      %p102 = por %p100, %p101
      %p103 = scmp.ne.s32.totalorder %s95, %s97
      %p104 = scmp.eq.s32.totalorder %s24, 1
      %p105 = por %p103, %p104
      %p106 = scmp.ne.s32.totalorder %s97, %s98
      %p107 = scmp.eq.s32.totalorder %s24, 0
      %p108 = por %p106, %p107
      %p109 = scmp.ne.s32.totalorder %s97, %s98
      %p110 = scmp.eq.s32.totalorder %s25, 1
      %p111 = por %p109, %p110
      %p113 = scmp.ne.s32.totalorder %s98, %s112
      %p114 = scmp.eq.s32.totalorder %s25, 0
      %p115 = por %p113, %p114
      %s117 = sadd.s32 %s116, 1
      %p120 = scmp.eq.s32.totalorder %s19, 1
      %p121 = scmp.ne.s32.totalorder %s116, %s118
      %p122 = scmp.eq.s32.totalorder %s19, 0
      %p123 = por %p121, %p122
      %p124 = scmp.ne.s32.totalorder %s116, %s118
      %p125 = scmp.eq.s32.totalorder %s24, 1
      %p126 = por %p124, %p125
      %p127 = scmp.ne.s32.totalorder %s118, %s119
      %p128 = scmp.eq.s32.totalorder %s24, 0
      %p129 = por %p127, %p128
      %p130 = scmp.ne.s32.totalorder %s118, %s119
      %p131 = scmp.eq.s32.totalorder %s25, 1
      %p132 = por %p130, %p131
      %p134 = scmp.ne.s32.totalorder %s119, %s133
      %p135 = scmp.eq.s32.totalorder %s25, 0
      %p136 = por %p134, %p135
      %s137 = ssub.s32 %s19, %s26
      %p138 = scmp.eq.s32.totalorder %s137, 0
      %s140 = sadd.s32 %s139, 1
      %s141 = scalar_select %p138, %s139, %s140
      %p144 = pneg %p138
      %p145 = scmp.eq.s32.totalorder %s19, 1
      %p146 = por %p144, %p145
      %p147 = scmp.ne.s32.totalorder %s139, %s142
      %p148 = scmp.eq.s32.totalorder %s19, 0
      %p149 = por %p147, %p148
      %p150 = scmp.ne.s32.totalorder %s139, %s142
      %p151 = scmp.eq.s32.totalorder %s24, 1
      %p152 = por %p150, %p151
      %p153 = scmp.ne.s32.totalorder %s142, %s143
      %p154 = scmp.eq.s32.totalorder %s24, 0
      %p155 = por %p153, %p154
      %p156 = scmp.ne.s32.totalorder %s142, %s143
      %p157 = scmp.eq.s32.totalorder %s25, 1
      %p158 = por %p156, %p157
      %p160 = scmp.ne.s32.totalorder %s143, %s159
      %p161 = scmp.eq.s32.totalorder %s25, 0
      %p162 = por %p160, %p161
      %p163 = scmp.le.s32.totalorder 1, %s19
      %p164 = scmp.lt.s32.totalorder %s19, 3
      %p165 = pnand %p163, %p164
      %p166 = pneg %p165
      // Predicated region
      $region9: #{tpu_custom_call.1} parent=5 // pred_check
        _
      $region10: #{tpu_custom_call.1} parent=5 // pred_check_branch
        %168 = sbr.rel (%p165) target = $region12
      $region11: #{tpu_custom_call.1} parent=5 // pred_region
        %s169 = ssub.s32 %s19, 1
        // Predicated region
        $region13: #{tpu_custom_call.1} parent=11 // pred_check
          %p170 = pneg %p66
        $region14: #{tpu_custom_call.1} parent=11 // pred_check_branch
          %172 = sbr.rel (%p170) target = $region16
        $region15: #{tpu_custom_call.1} parent=11 // pred_region
          %s174 = ssub.s32 256, 256
          %175 = vsyncadd [#allocation7], %s174
          %s176 = sshll.u32 [#allocation6], 4
          %s177 = int_to_ptr.vmem [resolvable:$true] %s176
          %182 = dma.hbm_to_vmem [thread:$0]  %s1, 256, %s177, [#allocation7], 128, 128, 8
        $region16: #{tpu_custom_call.1} parent=11 // pred_fallthru
          _
        // Predicated region
        $region17: #{tpu_custom_call.1} parent=11 // pred_check
          %p183 = pneg %p87
        $region18: #{tpu_custom_call.1} parent=11 // pred_check_branch
          %185 = sbr.rel (%p183) target = $region20
        $region19: #{tpu_custom_call.1} parent=11 // pred_region
          %s187 = ssub.s32 256, 256
          %188 = vsyncadd [#allocation7], %s187
          %s189 = sshll.u32 [#allocation8], 4
          %s190 = int_to_ptr.vmem [resolvable:$true] %s189
          %195 = dma.hbm_to_vmem [thread:$0]  %s2, 256, %s190, [#allocation7], 128, 128, 8
        $region20: #{tpu_custom_call.1} parent=11 // pred_fallthru
          _
        // Predicated region
        $region21: #{tpu_custom_call.1} parent=11 // pred_check
          %p196 = pneg %p108
        $region22: #{tpu_custom_call.1} parent=11 // pred_check_branch
          %198 = sbr.rel (%p196) target = $region24
        $region23: #{tpu_custom_call.1} parent=11 // pred_region
          _
        $region24: #{tpu_custom_call.1} parent=11 // pred_fallthru
          _
        // Predicated region
        $region25: #{tpu_custom_call.1} parent=11 // pred_check
          %p199 = pneg %p129
        $region26: #{tpu_custom_call.1} parent=11 // pred_check_branch
          %201 = sbr.rel (%p199) target = $region28
        $region27: #{tpu_custom_call.1} parent=11 // pred_region
          %s203 = ssub.s32 3072, 3072
          %204 = vsyncadd [#allocation10], %s203
          %s205 = sshll.u32 [#allocation9], 4
          %s206 = int_to_ptr.vmem [resolvable:$true] %s205
          %211 = dma.hbm_to_vmem [thread:$0]  %s4, 3072, %s206, [#allocation10], 64, 64, 4
        $region28: #{tpu_custom_call.1} parent=11 // pred_fallthru
          _
      $region12: #{tpu_custom_call.1} parent=5 // pred_fallthru
        _
      %p212 = scmp.lt.s32.totalorder %s19, 2
      // Predicated region
      $region29: #{tpu_custom_call.1} parent=5 // pred_check
        %p213 = pneg %p212
      $region30: #{tpu_custom_call.1} parent=5 // pred_check_branch
        %215 = sbr.rel (%p213) target = $region32
      $region31: #{tpu_custom_call.1} parent=5 // pred_region
        // Predicated region
        $region33: #{tpu_custom_call.1} parent=31 // pred_check
          %p216 = pneg %p39
        $region34: #{tpu_custom_call.1} parent=31 // pred_check_branch
          %218 = sbr.rel (%p216) target = $region36
        $region35: #{tpu_custom_call.1} parent=31 // pred_region
          %s219 = sand.u32 %s29, 1
          %s220 = scalar_lea.sflag [#allocation4], %s219
          %s221 = sand.u32 %s29, 1
          %s222 = smul.addr %s221, 48
          %s223 = scalar_lea.vmem [#allocation3], %s222
          %s225 = ssub.s32 768, 768
          %226 = vsyncadd %s220, %s225
          %s227 = smul.addr %s19, 6
          %s228 = smul.addr %s227, 128
          %s229 = scalar_lea.hbm %s0, %s228
          %s230 = sshll.u32 %s223, 4
          %s231 = int_to_ptr.vmem [resolvable:$true] %s230
          %236 = dma.hbm_to_vmem [thread:$0]  %s229, 768, %s231, %s220, 384, 384, 24
        $region36: #{tpu_custom_call.1} parent=31 // pred_fallthru
          _
      $region32: #{tpu_custom_call.1} parent=5 // pred_fallthru
        _
      %p237 = scmp.le.s32.totalorder 1, %s19
      %p238 = scmp.lt.s32.totalorder %s19, 3
      %p239 = pnand %p237, %p238
      %p240 = pneg %p239
      // Predicated region
      $region37: #{tpu_custom_call.1} parent=5 // pred_check
        _
      $region38: #{tpu_custom_call.1} parent=5 // pred_check_branch
        %242 = sbr.rel (%p239) target = $region40
      $region39: #{tpu_custom_call.1} parent=5 // pred_region
        %s243 = ssub.s32 %s19, 1
        %s244 = sand.u32 %s32, 1
        %s245 = scalar_lea.sflag [#allocation4], %s244
        %s246 = sand.u32 %s32, 1
        %s247 = smul.addr %s246, 48
        %s248 = scalar_lea.vmem [#allocation3], %s247
        // Predicated region
        $region41: #{tpu_custom_call.1} parent=39 // pred_check
          %p249 = pneg %p45
        $region42: #{tpu_custom_call.1} parent=39 // pred_check_branch
          %251 = sbr.rel (%p249) target = $region44
        $region43: #{tpu_custom_call.1} parent=39 // pred_region
          %252 = dma.done %s245, 768
        $region44: #{tpu_custom_call.1} parent=39 // pred_fallthru
          _
        // Predicated region
        $region45: #{tpu_custom_call.1} parent=39 // pred_check
          %p253 = pneg %p66
        $region46: #{tpu_custom_call.1} parent=39 // pred_check_branch
          %255 = sbr.rel (%p253) target = $region48
        $region47: #{tpu_custom_call.1} parent=39 // pred_region
          %256 = dma.done [#allocation7], 256
        $region48: #{tpu_custom_call.1} parent=39 // pred_fallthru
          _
        // Predicated region
        $region49: #{tpu_custom_call.1} parent=39 // pred_check
          %p257 = pneg %p87
        $region50: #{tpu_custom_call.1} parent=39 // pred_check_branch
          %259 = sbr.rel (%p257) target = $region52
        $region51: #{tpu_custom_call.1} parent=39 // pred_region
          %260 = dma.done [#allocation7], 256
        $region52: #{tpu_custom_call.1} parent=39 // pred_fallthru
          _
        // Predicated region
        $region53: #{tpu_custom_call.1} parent=39 // pred_check
          %p261 = pneg %p129
        $region54: #{tpu_custom_call.1} parent=39 // pred_check_branch
          %263 = sbr.rel (%p261) target = $region56
        $region55: #{tpu_custom_call.1} parent=39 // pred_region
          %264 = dma.done [#allocation10], 3072
        $region56: #{tpu_custom_call.1} parent=39 // pred_fallthru
          _
        %s265 = sand.u32 %s32, 1
        %s266 = scalar_lea.sflag [#allocation4], %s265
        %s267 = sand.u32 %s32, 1
        %s268 = smul.addr %s267, 48
        %s269 = scalar_lea.vmem [#allocation3], %s268
        %p270 = pneg %p45
        %p271 = pneg %p42
        %p272 = pneg %p66
        %p273 = pneg %p63
        %p274 = pneg %p87
        %p275 = pneg %p84
        %p276 = pneg %p108
        %p277 = pneg %p105
        %p278 = pneg %p129
        %p279 = pneg %p126
        %p280 = pneg %p155
        %p281 = pneg %p152
        %s282 = sand.u32 %s142, 1
        %s283 = scalar_lea.sflag [#allocation5], %s282
        %s284 = sand.u32 %s142, 1
        %s285 = smul.addr %s284, 12
        %s286 = scalar_lea.vmem [#allocation11], %s285
        %v288 = vld [vmem:[%s248] sm:$0xff]
        %v289 = vld [vmem:[%s248 + $0x8] sm:$0xff]
        %v290 = vld [vmem:[%s248 + $0x10] sm:$0xff]
        %v291 = vld [vmem:[%s248 + $0x18] sm:$0xff]
        %v292 = vld [vmem:[%s248 + $0x20] sm:$0xff]
        %v293 = vld [vmem:[%s248 + $0x28] sm:$0xff]
        %294 = vrot.lane.b32.xlu0 %v288, 18
        %v295 = vpop.permute.xlu0 %294
        %296 = vrot.lane.b32.xlu0 %v291, 18
        %v297 = vpop.permute.xlu0 %296
        %298 = vrot.lane.b32.xlu0 %v289, 18
        %v299 = vpop.permute.xlu0 %298
        %300 = vrot.lane.b32.xlu0 %v292, 18
        %v301 = vpop.permute.xlu0 %300
        %302 = vrot.lane.b32.xlu0 %v290, 18
        %v303 = vpop.permute.xlu0 %302
        %304 = vrot.lane.b32.xlu0 %v293, 18
        %v305 = vpop.permute.xlu0 %304
        %v306 = vlaneseq
        %v307 = vand.u32 %v306, 127
        %vm308 = vcmp.lt.s32.totalorder %v307, 18
        %v309 = vsel %vm308, %v299, %v303
        %v310 = vsel %vm308, %v301, %v305
        %v311 = vsel %vm308, %v295, %v299
        %v312 = vsel %vm308, %v297, %v301
        %v313 = vsel %vm308, %v303, %v295
        %v314 = vsel %vm308, %v305, %v297
        %315 = vrot.lane.b32.xlu0 %v313, 1
        %v316 = vpop.permute.xlu0 %315
        %317 = vrot.lane.b32.xlu0 %v314, 1
        %v318 = vpop.permute.xlu0 %317
        %319 = vrot.lane.b32.xlu0 %v311, 1
        %v320 = vpop.permute.xlu0 %319
        %321 = vrot.lane.b32.xlu0 %v312, 1
        %v322 = vpop.permute.xlu0 %321
        %323 = vrot.lane.b32.xlu0 %v309, 1
        %v324 = vpop.permute.xlu0 %323
        %325 = vrot.lane.b32.xlu0 %v310, 1
        %v326 = vpop.permute.xlu0 %325
        %vm327 = vcmp.lt.s32.totalorder %v307, 1
        %v328 = vsel %vm327, %v320, %v324
        %v329 = vsel %vm327, %v322, %v326
        %v330 = vsel %vm327, %v316, %v320
        %v331 = vsel %vm327, %v318, %v322
        %v332 = vsel %vm327, %v324, %v316
        %v333 = vsel %vm327, %v326, %v318
        %v334 = vpack.c.bf16 %v333, %v332
        %v335 = vpack.c.bf16 %v331, %v330
        %v336 = vpack.c.bf16 %v329, %v328
        %337 = vst [vmem:[#allocation2] sm:$0xff] %v334
        %338 = vst [vmem:[#allocation2 + $0x8] sm:$0xff] %v335
        %339 = vst [vmem:[#allocation2 + $0x10] sm:$0xff] %v336
        %v340 = vpack.c.bf16 %v314, %v313
        %v341 = vpack.c.bf16 %v312, %v311
        %v342 = vpack.c.bf16 %v310, %v309
        %343 = vst [vmem:[#allocation2 + $0x18] sm:$0xff] %v340
        %344 = vst [vmem:[#allocation2 + $0x20] sm:$0xff] %v341
        %345 = vst [vmem:[#allocation2 + $0x28] sm:$0xff] %v342
        %346 = vrot.lane.b32.xlu0 %v313, 127
        %v347 = vpop.permute.xlu0 %346
        %348 = vrot.lane.b32.xlu0 %v314, 127
        %v349 = vpop.permute.xlu0 %348
        %350 = vrot.lane.b32.xlu0 %v311, 127
        %v351 = vpop.permute.xlu0 %350
        %352 = vrot.lane.b32.xlu0 %v312, 127
        %v353 = vpop.permute.xlu0 %352
        %354 = vrot.lane.b32.xlu0 %v309, 127
        %v355 = vpop.permute.xlu0 %354
        %356 = vrot.lane.b32.xlu0 %v310, 127
        %v357 = vpop.permute.xlu0 %356
        %vm358 = vcmp.lt.s32.totalorder %v307, 127
        %v359 = vsel %vm358, %v351, %v355
        %v360 = vsel %vm358, %v353, %v357
        %v361 = vsel %vm358, %v347, %v351
        %v362 = vsel %vm358, %v349, %v353
        %v363 = vsel %vm358, %v355, %v347
        %v364 = vsel %vm358, %v357, %v349
        %v365 = vpack.c.bf16 %v362, %v361
        %v366 = vpack.c.bf16 %v360, %v359
        %v367 = vpack.c.bf16 %v364, %v363
        %368 = vst [vmem:[#allocation2 + $0x30] sm:$0xff] %v365
        %369 = vst [vmem:[#allocation2 + $0x38] sm:$0xff] %v366
        %370 = vst [vmem:[#allocation2 + $0x40] sm:$0xff] %v367
        %371 = vrot.lane.b32.xlu0 %v288, 1
        %v372 = vpop.permute.xlu0 %371
        %373 = vrot.lane.b32.xlu0 %v291, 1
        %v374 = vpop.permute.xlu0 %373
        %375 = vrot.lane.b32.xlu0 %v289, 1
        %v376 = vpop.permute.xlu0 %375
        %377 = vrot.lane.b32.xlu0 %v292, 1
        %v378 = vpop.permute.xlu0 %377
        %379 = vrot.lane.b32.xlu0 %v290, 1
        %v380 = vpop.permute.xlu0 %379
        %381 = vrot.lane.b32.xlu0 %v293, 1
        %v382 = vpop.permute.xlu0 %381
        %v383 = vsel %vm327, %v376, %v380
        %v384 = vsel %vm327, %v378, %v382
        %v385 = vsel %vm327, %v372, %v376
        %v386 = vsel %vm327, %v374, %v378
        %v387 = vsel %vm327, %v380, %v372
        %v388 = vsel %vm327, %v382, %v374
        %v389 = vpack.c.bf16 %v388, %v387
        %v390 = vpack.c.bf16 %v386, %v385
        %v391 = vpack.c.bf16 %v384, %v383
        %392 = vst [vmem:[#allocation2 + $0x48] sm:$0xff] %v389
        %393 = vst [vmem:[#allocation2 + $0x50] sm:$0xff] %v390
        %394 = vst [vmem:[#allocation2 + $0x58] sm:$0xff] %v391
        %v395 = vpack.c.bf16 %v291, %v288
        %v396 = vpack.c.bf16 %v292, %v289
        %v397 = vpack.c.bf16 %v293, %v290
        %398 = vst [vmem:[#allocation2 + $0x60] sm:$0xff] %v395
        %399 = vst [vmem:[#allocation2 + $0x68] sm:$0xff] %v396
        %400 = vst [vmem:[#allocation2 + $0x70] sm:$0xff] %v397
        %401 = vrot.lane.b32.xlu0 %v288, 127
        %v402 = vpop.permute.xlu0 %401
        %403 = vrot.lane.b32.xlu0 %v291, 127
        %v404 = vpop.permute.xlu0 %403
        %405 = vrot.lane.b32.xlu0 %v289, 127
        %v406 = vpop.permute.xlu0 %405
        %407 = vrot.lane.b32.xlu0 %v292, 127
        %v408 = vpop.permute.xlu0 %407
        %409 = vrot.lane.b32.xlu0 %v290, 127
        %v410 = vpop.permute.xlu0 %409
        %411 = vrot.lane.b32.xlu0 %v293, 127
        %v412 = vpop.permute.xlu0 %411
        %v413 = vsel %vm358, %v406, %v410
        %v414 = vsel %vm358, %v408, %v412
        %v415 = vsel %vm358, %v402, %v406
        %v416 = vsel %vm358, %v404, %v408
        %v417 = vsel %vm358, %v410, %v402
        %v418 = vsel %vm358, %v412, %v404
        %v419 = vpack.c.bf16 %v416, %v415
        %v420 = vpack.c.bf16 %v414, %v413
        %v421 = vpack.c.bf16 %v418, %v417
        %422 = vst [vmem:[#allocation2 + $0x78] sm:$0xff] %v419
        %423 = vst [vmem:[#allocation2 + $0x80] sm:$0xff] %v420
        %424 = vst [vmem:[#allocation2 + $0x88] sm:$0xff] %v421
        %425 = vrot.lane.b32.xlu0 %v288, 110
        %v426 = vpop.permute.xlu0 %425
        %427 = vrot.lane.b32.xlu0 %v291, 110
        %v428 = vpop.permute.xlu0 %427
        %429 = vrot.lane.b32.xlu0 %v289, 110
        %v430 = vpop.permute.xlu0 %429
        %431 = vrot.lane.b32.xlu0 %v292, 110
        %v432 = vpop.permute.xlu0 %431
        %433 = vrot.lane.b32.xlu0 %v290, 110
        %v434 = vpop.permute.xlu0 %433
        %435 = vrot.lane.b32.xlu0 %v293, 110
        %v436 = vpop.permute.xlu0 %435
        %vm437 = vcmp.lt.s32.totalorder %v307, 110
        %v438 = vsel %vm437, %v430, %v434
        %v439 = vsel %vm437, %v432, %v436
        %v440 = vsel %vm437, %v426, %v430
        %v441 = vsel %vm437, %v428, %v432
        %v442 = vsel %vm437, %v434, %v426
        %v443 = vsel %vm437, %v436, %v428
        %444 = vrot.lane.b32.xlu0 %v440, 1
        %v445 = vpop.permute.xlu0 %444
        %446 = vrot.lane.b32.xlu0 %v441, 1
        %v447 = vpop.permute.xlu0 %446
        %448 = vrot.lane.b32.xlu0 %v438, 1
        %v449 = vpop.permute.xlu0 %448
        %450 = vrot.lane.b32.xlu0 %v439, 1
        %v451 = vpop.permute.xlu0 %450
        %452 = vrot.lane.b32.xlu0 %v442, 1
        %v453 = vpop.permute.xlu0 %452
        %454 = vrot.lane.b32.xlu0 %v443, 1
        %v455 = vpop.permute.xlu0 %454
        %v456 = vsel %vm327, %v449, %v453
        %v457 = vsel %vm327, %v451, %v455
        %v458 = vsel %vm327, %v445, %v449
        %v459 = vsel %vm327, %v447, %v451
        %v460 = vsel %vm327, %v453, %v445
        %v461 = vsel %vm327, %v455, %v447
        %v462 = vpack.c.bf16 %v461, %v460
        %v463 = vpack.c.bf16 %v459, %v458
        %v464 = vpack.c.bf16 %v457, %v456
        %465 = vst [vmem:[#allocation2 + $0x90] sm:$0xff] %v462
        %466 = vst [vmem:[#allocation2 + $0x98] sm:$0xff] %v463
        %467 = vst [vmem:[#allocation2 + $0xa0] sm:$0xff] %v464
        %v468 = vpack.c.bf16 %v441, %v440
        %v469 = vpack.c.bf16 %v439, %v438
        %v470 = vpack.c.bf16 %v443, %v442
        %471 = vst [vmem:[#allocation2 + $0xa8] sm:$0xff] %v468
        %472 = vst [vmem:[#allocation2 + $0xb0] sm:$0xff] %v469
        %473 = vst [vmem:[#allocation2 + $0xb8] sm:$0xff] %v470
        %474 = vrot.lane.b32.xlu0 %v440, 127
        %v475 = vpop.permute.xlu0 %474
        %476 = vrot.lane.b32.xlu0 %v441, 127
        %v477 = vpop.permute.xlu0 %476
        %478 = vrot.lane.b32.xlu0 %v438, 127
        %v479 = vpop.permute.xlu0 %478
        %480 = vrot.lane.b32.xlu0 %v439, 127
        %v481 = vpop.permute.xlu0 %480
        %482 = vrot.lane.b32.xlu0 %v442, 127
        %v483 = vpop.permute.xlu0 %482
        %484 = vrot.lane.b32.xlu0 %v443, 127
        %v485 = vpop.permute.xlu0 %484
        %v486 = vsel %vm358, %v479, %v483
        %v487 = vsel %vm358, %v481, %v485
        %v488 = vsel %vm358, %v475, %v479
        %v489 = vsel %vm358, %v477, %v481
        %v490 = vsel %vm358, %v483, %v475
        %v491 = vsel %vm358, %v485, %v477
        %v492 = vpack.c.bf16 %v489, %v488
        %v493 = vpack.c.bf16 %v487, %v486
        %v494 = vpack.c.bf16 %v491, %v490
        %495 = vst [vmem:[#allocation2 + $0xc0] sm:$0xff] %v492
        %496 = vst [vmem:[#allocation2 + $0xc8] sm:$0xff] %v493
        %497 = vst [vmem:[#allocation2 + $0xd0] sm:$0xff] %v494
        %v498 = vld [vmem:[#allocation6] sm:$0xff]
        %v499 = vld [vmem:[#allocation6 + $0x8] sm:$0xff]
        %v500 = vld [vmem:[#allocation2] sm:$0xff]
        %v501 = vld [vmem:[#allocation2 + $0x8] sm:$0xff]
        %v502 = vld [vmem:[#allocation2 + $0x10] sm:$0xff]
        %v503 = vld [vmem:[#allocation2 + $0x18] sm:$0xff]
        %v504 = vld [vmem:[#allocation2 + $0x20] sm:$0xff]
        %v505 = vld [vmem:[#allocation2 + $0x28] sm:$0xff]
        %v506 = vld [vmem:[#allocation2 + $0x30] sm:$0xff]
        %v507 = vld [vmem:[#allocation2 + $0x38] sm:$0xff]
        %v508 = vld [vmem:[#allocation2 + $0x40] sm:$0xff]
        %v509 = vld [vmem:[#allocation2 + $0x48] sm:$0xff]
        %v510 = vld [vmem:[#allocation2 + $0x50] sm:$0xff]
        %v511 = vld [vmem:[#allocation2 + $0x58] sm:$0xff]
        %v512 = vld [vmem:[#allocation2 + $0x60] sm:$0xff]
        %v513 = vld [vmem:[#allocation2 + $0x68] sm:$0xff]
        %v514 = vld [vmem:[#allocation2 + $0x70] sm:$0xff]
        %v515 = vld [vmem:[#allocation2 + $0x78] sm:$0xff]
        %v516 = vld [vmem:[#allocation2 + $0x80] sm:$0xff]
        %v517 = vld [vmem:[#allocation2 + $0x88] sm:$0xff]
        %v518 = vld [vmem:[#allocation2 + $0x90] sm:$0xff]
        %v519 = vld [vmem:[#allocation2 + $0x98] sm:$0xff]
        %v520 = vld [vmem:[#allocation2 + $0xa0] sm:$0xff]
        %v521 = vld [vmem:[#allocation2 + $0xa8] sm:$0xff]
        %v522 = vld [vmem:[#allocation2 + $0xb0] sm:$0xff]
        %v523 = vld [vmem:[#allocation2 + $0xb8] sm:$0xff]
        %v524 = vld [vmem:[#allocation2 + $0xc0] sm:$0xff]
        %v525 = vld [vmem:[#allocation2 + $0xc8] sm:$0xff]
        %v526 = vld [vmem:[#allocation2 + $0xd0] sm:$0xff]
        %v529 = vunpack.c.l.b16 %v498
        %v530 = vunpack.c.h.b16 %v498
        %v531 = vunpack.c.l.b16 %v499
        %v532 = vunpack.c.h.b16 %v499
        %v533 = vpack.c.b16 %v531, %v529
        %v534 = vpack.c.b16 %v532, %v530
        %vm536 = vcmask 130048
        %v538 = vsel %vm536, %v534, 0
        %540 = vmatprep.subr.bf16.mxu0 %v501
        %541 = vmatpush1.bf16.msra.mxu0 %v500
        %542 = vmatprep.subr.bf16.mxu0 %v504
        %543 = vmatpush1.bf16.msra.mxu0 %v503
        %544 = vmatprep.subr.bf16.mxu0 %v507
        %545 = vmatpush1.bf16.msra.mxu0 %v506
        %546 = vmatprep.subr.bf16.mxu0 %v510
        %547 = vmatpush1.bf16.msra.mxu0 %v509
        %548 = vmatprep.subr.bf16.mxu0 %v513
        %549 = vmatpush1.bf16.msra.mxu0 %v512
        %550 = vmatprep.subr.bf16.mxu0 %v516
        %551 = vmatpush1.bf16.msra.mxu0 %v515
        %552 = vmatprep.subr.bf16.mxu0 %v519
        %553 = vmatpush1.bf16.msra.mxu0 %v518
        %554 = vmatprep.subr.bf16.mxu0 %v522
        %555 = vmatpush1.bf16.msra.mxu0 %v521
        %556 = vmatprep.subr.bf16.mxu0 %v525
        %557 = vmatpush1.bf16.msra.mxu0 %v524
        %558 = vmatprep.subr.bf16.mxu0 0
        %559 = vmatpush1.bf16.msra.mxu0 0
        %560 = vmatprep.subr.bf16.mxu0 0
        %561 = vmatpush1.bf16.msra.mxu0 0
        %562 = vmatprep.subr.bf16.mxu0 0
        %563 = vmatpush1.bf16.msra.mxu0 0
        %564 = vmatprep.subr.bf16.mxu0 0
        %565 = vmatpush1.bf16.msra.mxu0 0
        %566 = vmatprep.subr.bf16.mxu0 0
        %567 = vmatpush1.bf16.msra.mxu0 0
        %568 = vmatprep.subr.bf16.mxu0 0
        %569 = vmatpush1.bf16.msra.mxu0 0
        %570 = vmatprep.subr.bf16.mxu0 0
        %571 = vmatpush1.bf16.msra.mxu0 0
        %572 = vmatprep.mubr.bf16.mxu0 %v538
        %573 = vmatmul.mubr.bf16.gmra.mrb[0].mxu0 %v533
        %v574 = vpop.f32.mrb[0].mxu0
        %v575 = vadd.f32 0.0, %v574
        %v576 = vpop.f32.mrb[0].mxu0
        %v577 = vadd.f32 0.0, %v576
        %v578 = vpop.f32.mrb[0].mxu0
        %v579 = vadd.f32 0.0, %v578
        %v580 = vpop.f32.mrb[0].mxu0
        %v581 = vadd.f32 0.0, %v580
        %582 = vdwg.mxu0
        %583 = vmatprep.subr.bf16.mxu0 0
        %584 = vmatpush1.bf16.msra.mxu0 %v502
        %585 = vmatprep.subr.bf16.mxu0 0
        %586 = vmatpush1.bf16.msra.mxu0 %v505
        %587 = vmatprep.subr.bf16.mxu0 0
        %588 = vmatpush1.bf16.msra.mxu0 %v508
        %589 = vmatprep.subr.bf16.mxu0 0
        %590 = vmatpush1.bf16.msra.mxu0 %v511
        %591 = vmatprep.subr.bf16.mxu0 0
        %592 = vmatpush1.bf16.msra.mxu0 %v514
        %593 = vmatprep.subr.bf16.mxu0 0
        %594 = vmatpush1.bf16.msra.mxu0 %v517
        %595 = vmatprep.subr.bf16.mxu0 0
        %596 = vmatpush1.bf16.msra.mxu0 %v520
        %597 = vmatprep.subr.bf16.mxu0 0
        %598 = vmatpush1.bf16.msra.mxu0 %v523
        %599 = vmatprep.subr.bf16.mxu0 0
        %600 = vmatpush1.bf16.msra.mxu0 %v526
        %601 = vmatprep.subr.bf16.mxu0 0
        %602 = vmatpush1.bf16.msra.mxu0 0
        %603 = vmatprep.subr.bf16.mxu0 0
        %604 = vmatpush1.bf16.msra.mxu0 0
        %605 = vmatprep.subr.bf16.mxu0 0
        %606 = vmatpush1.bf16.msra.mxu0 0
        %607 = vmatprep.subr.bf16.mxu0 0
        %608 = vmatpush1.bf16.msra.mxu0 0
        %609 = vmatprep.subr.bf16.mxu0 0
        %610 = vmatpush1.bf16.msra.mxu0 0
        %611 = vmatprep.subr.bf16.mxu0 0
        %612 = vmatpush1.bf16.msra.mxu0 0
        %613 = vmatprep.subr.bf16.mxu0 0
        %614 = vmatpush1.bf16.msra.mxu0 0
        %615 = vmatprep.mubr.bf16.mxu0 %v538
        %616 = vmatmul.mubr.bf16.gmra.mrb[0].mxu0 %v533
        %v617 = vpop.f32.mrb[0].mxu0
        %v618 = vadd.f32 0.0, %v617
        %v619 = vpop.f32.mrb[0].mxu0
        %v620 = vpop.f32.mrb[0].mxu0
        %v621 = vadd.f32 0.0, %v620
        %v622 = vpop.f32.mrb[0].mxu0
        %623 = vdwg.mxu0
        %v624 = vpack.c.bf16 %v579, %v575
        %v625 = vpack.c.bf16 %v581, %v577
        %v626 = vpack.c.bf16 %v621, %v618
        %v627 = vld [vmem:[#allocation9] sm:$0xf]
        %v628 = vld [vmem:[#allocation9 + $0x4] sm:$0xf]
        %v629 = vld [vmem:[#allocation9 + $0x8] sm:$0xf]
        %v630 = vld [vmem:[#allocation9 + $0xc] sm:$0xf]
        %v631 = vld [vmem:[#allocation9 + $0x10] sm:$0xf]
        %v632 = vld [vmem:[#allocation9 + $0x14] sm:$0xf]
        %v633 = vld [vmem:[#allocation9 + $0x18] sm:$0xf]
        %v634 = vld [vmem:[#allocation9 + $0x1c] sm:$0xf]
        %v635 = vld [vmem:[#allocation9 + $0x20] sm:$0xf]
        %v636 = vld [vmem:[#allocation9 + $0x24] sm:$0xf]
        %v637 = vld [vmem:[#allocation9 + $0x28] sm:$0xf]
        %v638 = vld [vmem:[#allocation9 + $0x2c] sm:$0xf]
        %v639 = vld [vmem:[#allocation9 + $0x30] sm:$0xf]
        %v640 = vld [vmem:[#allocation9 + $0x34] sm:$0xf]
        %v641 = vld [vmem:[#allocation9 + $0x38] sm:$0xf]
        %v642 = vld [vmem:[#allocation9 + $0x3c] sm:$0xf]
        %v643 = vld [vmem:[#allocation9 + $0x40] sm:$0xf]
        %v644 = vld [vmem:[#allocation9 + $0x44] sm:$0xf]
        %v645 = vld [vmem:[#allocation9 + $0x48] sm:$0xf]
        %v646 = vld [vmem:[#allocation9 + $0x4c] sm:$0xf]
        %v647 = vld [vmem:[#allocation9 + $0x50] sm:$0xf]
        %v648 = vld [vmem:[#allocation9 + $0x54] sm:$0xf]
        %v649 = vld [vmem:[#allocation9 + $0x58] sm:$0xf]
        %v650 = vld [vmem:[#allocation9 + $0x5c] sm:$0xf]
        %v651 = vld [vmem:[#allocation9 + $0x60] sm:$0xf]
        %v652 = vld [vmem:[#allocation9 + $0x64] sm:$0xf]
        %v653 = vld [vmem:[#allocation9 + $0x68] sm:$0xf]
        %v654 = vld [vmem:[#allocation9 + $0x6c] sm:$0xf]
        %v655 = vld [vmem:[#allocation9 + $0x70] sm:$0xf]
        %v656 = vld [vmem:[#allocation9 + $0x74] sm:$0xf]
        %v657 = vld [vmem:[#allocation9 + $0x78] sm:$0xf]
        %v658 = vld [vmem:[#allocation9 + $0x7c] sm:$0xf]
        %v659 = vld [vmem:[#allocation9 + $0x80] sm:$0xf]
        %v660 = vld [vmem:[#allocation9 + $0x84] sm:$0xf]
        %v661 = vld [vmem:[#allocation9 + $0x88] sm:$0xf]
        %v662 = vld [vmem:[#allocation9 + $0x8c] sm:$0xf]
        %v663 = vld [vmem:[#allocation9 + $0x90] sm:$0xf]
        %v664 = vld [vmem:[#allocation9 + $0x94] sm:$0xf]
        %v665 = vld [vmem:[#allocation9 + $0x98] sm:$0xf]
        %v666 = vld [vmem:[#allocation9 + $0x9c] sm:$0xf]
        %v667 = vld [vmem:[#allocation9 + $0xa0] sm:$0xf]
        %v668 = vld [vmem:[#allocation9 + $0xa4] sm:$0xf]
        %v669 = vld [vmem:[#allocation9 + $0xa8] sm:$0xf]
        %v670 = vld [vmem:[#allocation9 + $0xac] sm:$0xf]
        %v671 = vld [vmem:[#allocation9 + $0xb0] sm:$0xf]
        %v672 = vld [vmem:[#allocation9 + $0xb4] sm:$0xf]
        %v673 = vld [vmem:[#allocation9 + $0xb8] sm:$0xf]
        %v674 = vld [vmem:[#allocation9 + $0xbc] sm:$0xf]
        %v723 = vunpack.c.l.b16 %v627
        %v724 = vunpack.c.l.b16 %v628
        %v725 = vunpack.c.l.b16 %v629
        %v726 = vunpack.c.l.b16 %v630
        %v727 = vunpack.c.l.b16 %v631
        %v728 = vunpack.c.l.b16 %v632
        %v729 = vunpack.c.l.b16 %v633
        %v730 = vunpack.c.l.b16 %v634
        %v731 = vunpack.c.l.b16 %v635
        %v732 = vunpack.c.l.b16 %v636
        %v733 = vunpack.c.l.b16 %v637
        %v734 = vunpack.c.l.b16 %v638
        %v735 = vunpack.c.l.b16 %v639
        %v736 = vunpack.c.l.b16 %v640
        %v737 = vunpack.c.l.b16 %v641
        %v738 = vunpack.c.l.b16 %v642
        %v739 = vunpack.c.l.b16 %v643
        %v740 = vunpack.c.l.b16 %v644
        %v741 = vunpack.c.l.b16 %v645
        %v742 = vunpack.c.l.b16 %v646
        %v743 = vunpack.c.l.b16 %v647
        %v744 = vunpack.c.l.b16 %v648
        %v745 = vunpack.c.l.b16 %v649
        %v746 = vunpack.c.l.b16 %v650
        %v747 = vunpack.c.l.b16 %v651
        %v748 = vunpack.c.l.b16 %v652
        %v749 = vunpack.c.l.b16 %v653
        %v750 = vunpack.c.l.b16 %v654
        %v751 = vunpack.c.l.b16 %v655
        %v752 = vunpack.c.l.b16 %v656
        %v753 = vunpack.c.l.b16 %v657
        %v754 = vunpack.c.l.b16 %v658
        %v755 = vunpack.c.l.b16 %v659
        %v756 = vunpack.c.l.b16 %v660
        %v757 = vunpack.c.l.b16 %v661
        %v758 = vunpack.c.l.b16 %v662
        %v759 = vunpack.c.l.b16 %v663
        %v760 = vunpack.c.l.b16 %v664
        %v761 = vunpack.c.l.b16 %v665
        %v762 = vunpack.c.l.b16 %v666
        %v763 = vunpack.c.l.b16 %v667
        %v764 = vunpack.c.l.b16 %v668
        %v765 = vunpack.c.l.b16 %v669
        %v766 = vunpack.c.l.b16 %v670
        %v767 = vunpack.c.l.b16 %v671
        %v768 = vunpack.c.l.b16 %v672
        %v769 = vunpack.c.l.b16 %v673
        %v770 = vunpack.c.l.b16 %v674
        %v771 = vpack.c.b16 %v724, %v723
        %v772 = vpack.c.b16 %v726, %v725
        %v773 = vpack.c.b16 %v728, %v727
        %v774 = vpack.c.b16 %v730, %v729
        %v775 = vpack.c.b16 %v732, %v731
        %v776 = vpack.c.b16 %v734, %v733
        %v777 = vpack.c.b16 %v736, %v735
        %v778 = vpack.c.b16 %v738, %v737
        %v779 = vpack.c.b16 %v740, %v739
        %v780 = vpack.c.b16 %v742, %v741
        %v781 = vpack.c.b16 %v744, %v743
        %v782 = vpack.c.b16 %v746, %v745
        %v783 = vpack.c.b16 %v748, %v747
        %v784 = vpack.c.b16 %v750, %v749
        %v785 = vpack.c.b16 %v752, %v751
        %v786 = vpack.c.b16 %v754, %v753
        %v787 = vpack.c.b16 %v756, %v755
        %v788 = vpack.c.b16 %v758, %v757
        %v789 = vpack.c.b16 %v760, %v759
        %v790 = vpack.c.b16 %v762, %v761
        %v791 = vpack.c.b16 %v764, %v763
        %v792 = vpack.c.b16 %v766, %v765
        %v793 = vpack.c.b16 %v768, %v767
        %v794 = vpack.c.b16 %v770, %v769
        %819 = vmatprep.subr.bf16.mxu0 0
        %820 = vmatpush1.bf16.msra.mxu0 %v771
        %821 = vmatprep.subr.bf16.mxu0 0
        %822 = vmatpush1.bf16.msra.mxu0 %v772
        %823 = vmatprep.subr.bf16.mxu0 0
        %824 = vmatpush1.bf16.msra.mxu0 %v773
        %825 = vmatprep.subr.bf16.mxu0 0
        %826 = vmatpush1.bf16.msra.mxu0 %v774
        %827 = vmatprep.subr.bf16.mxu0 0
        %828 = vmatpush1.bf16.msra.mxu0 %v775
        %829 = vmatprep.subr.bf16.mxu0 0
        %830 = vmatpush1.bf16.msra.mxu0 %v776
        %831 = vmatprep.subr.bf16.mxu0 0
        %832 = vmatpush1.bf16.msra.mxu0 %v777
        %833 = vmatprep.subr.bf16.mxu0 0
        %834 = vmatpush1.bf16.msra.mxu0 %v778
        %835 = vmatprep.subr.bf16.mxu0 0
        %836 = vmatpush1.bf16.msra.mxu0 %v779
        %837 = vmatprep.subr.bf16.mxu0 0
        %838 = vmatpush1.bf16.msra.mxu0 %v780
        %839 = vmatprep.subr.bf16.mxu0 0
        %840 = vmatpush1.bf16.msra.mxu0 %v781
        %841 = vmatprep.subr.bf16.mxu0 0
        %842 = vmatpush1.bf16.msra.mxu0 %v782
        %843 = vmatprep.subr.bf16.mxu0 0
        %844 = vmatpush1.bf16.msra.mxu0 %v783
        %845 = vmatprep.subr.bf16.mxu0 0
        %846 = vmatpush1.bf16.msra.mxu0 %v784
        %847 = vmatprep.subr.bf16.mxu0 0
        %848 = vmatpush1.bf16.msra.mxu0 %v785
        %849 = vmatprep.subr.bf16.mxu0 0
        %850 = vmatpush1.bf16.msra.mxu0 %v786
        %851 = vmatprep.mubr.bf16.mxu0 %v625
        %852 = vmatmul.mubr.bf16.gmra.mrb[0].mxu0 %v624
        %v853 = vpop.f32.mrb[0].mxu0
        %v854 = vadd.f32 0.0, %v853
        %v855 = vpop.f32.mrb[0].mxu0
        %v856 = vpop.f32.mrb[0].mxu0
        %v857 = vadd.f32 0.0, %v856
        %v858 = vpop.f32.mrb[0].mxu0
        %859 = vdwg.mxu0
        %860 = vmatprep.subr.bf16.mxu0 0
        %861 = vmatpush1.bf16.msra.mxu0 %v787
        %862 = vmatprep.subr.bf16.mxu0 0
        %863 = vmatpush1.bf16.msra.mxu0 %v788
        %864 = vmatprep.subr.bf16.mxu0 0
        %865 = vmatpush1.bf16.msra.mxu0 %v789
        %866 = vmatprep.subr.bf16.mxu0 0
        %867 = vmatpush1.bf16.msra.mxu0 %v790
        %868 = vmatprep.subr.bf16.mxu0 0
        %869 = vmatpush1.bf16.msra.mxu0 %v791
        %870 = vmatprep.subr.bf16.mxu0 0
        %871 = vmatpush1.bf16.msra.mxu0 %v792
        %872 = vmatprep.subr.bf16.mxu0 0
        %873 = vmatpush1.bf16.msra.mxu0 %v793
        %874 = vmatprep.subr.bf16.mxu0 0
        %875 = vmatpush1.bf16.msra.mxu0 %v794
        %876 = vmatprep.subr.bf16.mxu0 0
        %877 = vmatpush1.bf16.msra.mxu0 0
        %878 = vmatprep.subr.bf16.mxu0 0
        %879 = vmatpush1.bf16.msra.mxu0 0
        %880 = vmatprep.subr.bf16.mxu0 0
        %881 = vmatpush1.bf16.msra.mxu0 0
        %882 = vmatprep.subr.bf16.mxu0 0
        %883 = vmatpush1.bf16.msra.mxu0 0
        %884 = vmatprep.subr.bf16.mxu0 0
        %885 = vmatpush1.bf16.msra.mxu0 0
        %886 = vmatprep.subr.bf16.mxu0 0
        %887 = vmatpush1.bf16.msra.mxu0 0
        %888 = vmatprep.subr.bf16.mxu0 0
        %889 = vmatpush1.bf16.msra.mxu0 0
        %890 = vmatprep.subr.bf16.mxu0 0
        %891 = vmatpush1.bf16.msra.mxu0 0
        %892 = vmatprep.mubr.bf16.mxu0 0
        %893 = vmatmul.mubr.bf16.gmra.mrb[0].mxu0 %v626
        %v894 = vpop.f32.mrb[0].mxu0
        %v895 = vadd.f32 %v854, %v894
        %v896 = vpop.f32.mrb[0].mxu0
        %v897 = vpop.f32.mrb[0].mxu0
        %v898 = vadd.f32 %v857, %v897
        %v899 = vpop.f32.mrb[0].mxu0
        %900 = vdwg.mxu0
        %v901 = vmul.f32 %v895, 0.00390625
        %v902 = vmul.f32 %v898, 0.00390625
        %904 = vset.pattern.permute.xlu0 0
        %905 = vperm.xlu0 %904, %v901
        %v906 = vpop.permute.xlu0 %905
        %909 = vset.pattern.permute.xlu0 0
        %910 = vperm.xlu0 %909, %v902
        %v911 = vpop.permute.xlu0 %910
        %v913 = vsub.f32 %v575, %v906
        %v914 = vsub.f32 %v577, %v906
        %v915 = vsub.f32 %v618, %v906
        %v916 = vsub.f32 %v579, %v911
        %v917 = vsub.f32 %v581, %v911
        %v918 = vsub.f32 %v621, %v911
        %v919 = vmul.f32 %v913, %v913
        %v920 = vmul.f32 %v914, %v914
        %v921 = vmul.f32 %v915, %v915
        %v922 = vmul.f32 %v916, %v916
        %v923 = vmul.f32 %v917, %v917
        %v924 = vmul.f32 %v918, %v918
        %v925 = vpack.c.bf16 %v922, %v919
        %v926 = vpack.c.bf16 %v923, %v920
        %v927 = vpack.c.bf16 %v924, %v921
        %928 = vmatprep.subr.bf16.mxu0 0
        %929 = vmatpush1.bf16.msra.mxu0 %v771
        %930 = vmatprep.subr.bf16.mxu0 0
        %931 = vmatpush1.bf16.msra.mxu0 %v772
        %932 = vmatprep.subr.bf16.mxu0 0
        %933 = vmatpush1.bf16.msra.mxu0 %v773
        %934 = vmatprep.subr.bf16.mxu0 0
        %935 = vmatpush1.bf16.msra.mxu0 %v774
        %936 = vmatprep.subr.bf16.mxu0 0
        %937 = vmatpush1.bf16.msra.mxu0 %v775
        %938 = vmatprep.subr.bf16.mxu0 0
        %939 = vmatpush1.bf16.msra.mxu0 %v776
        %940 = vmatprep.subr.bf16.mxu0 0
        %941 = vmatpush1.bf16.msra.mxu0 %v777
        %942 = vmatprep.subr.bf16.mxu0 0
        %943 = vmatpush1.bf16.msra.mxu0 %v778
        %944 = vmatprep.subr.bf16.mxu0 0
        %945 = vmatpush1.bf16.msra.mxu0 %v779
        %946 = vmatprep.subr.bf16.mxu0 0
        %947 = vmatpush1.bf16.msra.mxu0 %v780
        %948 = vmatprep.subr.bf16.mxu0 0
        %949 = vmatpush1.bf16.msra.mxu0 %v781
        %950 = vmatprep.subr.bf16.mxu0 0
        %951 = vmatpush1.bf16.msra.mxu0 %v782
        %952 = vmatprep.subr.bf16.mxu0 0
        %953 = vmatpush1.bf16.msra.mxu0 %v783
        %954 = vmatprep.subr.bf16.mxu0 0
        %955 = vmatpush1.bf16.msra.mxu0 %v784
        %956 = vmatprep.subr.bf16.mxu0 0
        %957 = vmatpush1.bf16.msra.mxu0 %v785
        %958 = vmatprep.subr.bf16.mxu0 0
        %959 = vmatpush1.bf16.msra.mxu0 %v786
        %960 = vmatprep.mubr.bf16.mxu0 %v926
        %961 = vmatmul.mubr.bf16.gmra.mrb[0].mxu0 %v925
        %v962 = vpop.f32.mrb[0].mxu0
        %v963 = vadd.f32 0.0, %v962
        %v964 = vpop.f32.mrb[0].mxu0
        %v965 = vpop.f32.mrb[0].mxu0
        %v966 = vadd.f32 0.0, %v965
        %v967 = vpop.f32.mrb[0].mxu0
        %968 = vdwg.mxu0
        %969 = vmatprep.subr.bf16.mxu0 0
        %970 = vmatpush1.bf16.msra.mxu0 %v787
        %971 = vmatprep.subr.bf16.mxu0 0
        %972 = vmatpush1.bf16.msra.mxu0 %v788
        %973 = vmatprep.subr.bf16.mxu0 0
        %974 = vmatpush1.bf16.msra.mxu0 %v789
        %975 = vmatprep.subr.bf16.mxu0 0
        %976 = vmatpush1.bf16.msra.mxu0 %v790
        %977 = vmatprep.subr.bf16.mxu0 0
        %978 = vmatpush1.bf16.msra.mxu0 %v791
        %979 = vmatprep.subr.bf16.mxu0 0
        %980 = vmatpush1.bf16.msra.mxu0 %v792
        %981 = vmatprep.subr.bf16.mxu0 0
        %982 = vmatpush1.bf16.msra.mxu0 %v793
        %983 = vmatprep.subr.bf16.mxu0 0
        %984 = vmatpush1.bf16.msra.mxu0 %v794
        %985 = vmatprep.subr.bf16.mxu0 0
        %986 = vmatpush1.bf16.msra.mxu0 0
        %987 = vmatprep.subr.bf16.mxu0 0
        %988 = vmatpush1.bf16.msra.mxu0 0
        %989 = vmatprep.subr.bf16.mxu0 0
        %990 = vmatpush1.bf16.msra.mxu0 0
        %991 = vmatprep.subr.bf16.mxu0 0
        %992 = vmatpush1.bf16.msra.mxu0 0
        %993 = vmatprep.subr.bf16.mxu0 0
        %994 = vmatpush1.bf16.msra.mxu0 0
        %995 = vmatprep.subr.bf16.mxu0 0
        %996 = vmatpush1.bf16.msra.mxu0 0
        %997 = vmatprep.subr.bf16.mxu0 0
        %998 = vmatpush1.bf16.msra.mxu0 0
        %999 = vmatprep.subr.bf16.mxu0 0
        %1000 = vmatpush1.bf16.msra.mxu0 0
        %1001 = vmatprep.mubr.bf16.mxu0 0
        %1002 = vmatmul.mubr.bf16.gmra.mrb[0].mxu0 %v927
        %v1003 = vpop.f32.mrb[0].mxu0
        %v1004 = vadd.f32 %v963, %v1003
        %v1005 = vpop.f32.mrb[0].mxu0
        %v1006 = vpop.f32.mrb[0].mxu0
        %v1007 = vadd.f32 %v966, %v1006
        %v1008 = vpop.f32.mrb[0].mxu0
        %1009 = vdwg.mxu0
        %v1010 = vmul.f32 %v1004, 0.00390625
        %v1011 = vmul.f32 %v1007, 0.00390625
        %v1012 = vadd.f32 %v1010, 1e-05
        %v1013 = vadd.f32 %v1011, 1e-05
        %v1014 = vrsqrt.pop %v1012
        %v1015 = vrsqrt.pop %v1013
        %1017 = vset.pattern.permute.xlu0 0
        %1018 = vperm.xlu0 %1017, %v1014
        %v1019 = vpop.permute.xlu0 %1018
        %1022 = vset.pattern.permute.xlu0 0
        %1023 = vperm.xlu0 %1022, %v1015
        %v1024 = vpop.permute.xlu0 %1023
        %v1026 = vmul.f32 %v913, %v1019
        %v1027 = vmul.f32 %v914, %v1019
        %v1028 = vmul.f32 %v915, %v1019
        %v1029 = vmul.f32 %v916, %v1024
        %v1030 = vmul.f32 %v917, %v1024
        %v1031 = vmul.f32 %v918, %v1024
        %v1032 = vmax.f32 %v1026, 0.0
        %v1033 = vmax.f32 %v1027, 0.0
        %v1034 = vmax.f32 %v1028, 0.0
        %v1035 = vmax.f32 %v1029, 0.0
        %v1036 = vmax.f32 %v1030, 0.0
        %v1037 = vmax.f32 %v1031, 0.0
        %v1038 = vld [vmem:[%s3] sm:$0x7]
        %v1040 = vlaneseq
        %v1041 = vshrl.u32 %v1040, 7
        %v1042 = vsub.s32 0, %v1041
        %v1043 = vrot.slane %v1038, %v1042
        %v1044 = vlaneseq
        %v1045 = vshrl.u32 %v1044, 7
        %v1046 = vsub.s32 1, %v1045
        %v1047 = vrot.slane %v1038, %v1046
        %v1048 = vlaneseq
        %v1049 = vshrl.u32 %v1048, 7
        %v1050 = vsub.s32 2, %v1049
        %v1051 = vrot.slane %v1038, %v1050
        %v1055 = vmul.f32 %v1032, %v1043
        %v1056 = vmul.f32 %v1033, %v1047
        %v1057 = vmul.f32 %v1034, %v1051
        %v1058 = vmul.f32 %v1035, %v1043
        %v1059 = vmul.f32 %v1036, %v1047
        %v1060 = vmul.f32 %v1037, %v1051
        %1061 = vrot.lane.b32.xlu0 %v1055, 18
        %v1062 = vpop.permute.xlu0 %1061
        %1063 = vrot.lane.b32.xlu0 %v1058, 18
        %v1064 = vpop.permute.xlu0 %1063
        %1065 = vrot.lane.b32.xlu0 %v1056, 18
        %v1066 = vpop.permute.xlu0 %1065
        %1067 = vrot.lane.b32.xlu0 %v1059, 18
        %v1068 = vpop.permute.xlu0 %1067
        %1069 = vrot.lane.b32.xlu0 %v1057, 18
        %v1070 = vpop.permute.xlu0 %1069
        %1071 = vrot.lane.b32.xlu0 %v1060, 18
        %v1072 = vpop.permute.xlu0 %1071
        %v1073 = vsel %vm308, %v1066, %v1070
        %v1074 = vsel %vm308, %v1068, %v1072
        %v1075 = vsel %vm308, %v1062, %v1066
        %v1076 = vsel %vm308, %v1064, %v1068
        %v1077 = vsel %vm308, %v1070, %v1062
        %v1078 = vsel %vm308, %v1072, %v1064
        %1079 = vrot.lane.b32.xlu0 %v1077, 1
        %v1080 = vpop.permute.xlu0 %1079
        %1081 = vrot.lane.b32.xlu0 %v1078, 1
        %v1082 = vpop.permute.xlu0 %1081
        %1083 = vrot.lane.b32.xlu0 %v1075, 1
        %v1084 = vpop.permute.xlu0 %1083
        %1085 = vrot.lane.b32.xlu0 %v1076, 1
        %v1086 = vpop.permute.xlu0 %1085
        %1087 = vrot.lane.b32.xlu0 %v1073, 1
        %v1088 = vpop.permute.xlu0 %1087
        %1089 = vrot.lane.b32.xlu0 %v1074, 1
        %v1090 = vpop.permute.xlu0 %1089
        %v1091 = vsel %vm327, %v1084, %v1088
        %v1092 = vsel %vm327, %v1086, %v1090
        %v1093 = vsel %vm327, %v1080, %v1084
        %v1094 = vsel %vm327, %v1082, %v1086
        %v1095 = vsel %vm327, %v1088, %v1080
        %v1096 = vsel %vm327, %v1090, %v1082
        %v1097 = vpack.c.bf16 %v1096, %v1095
        %v1098 = vpack.c.bf16 %v1094, %v1093
        %v1099 = vpack.c.bf16 %v1092, %v1091
        %1100 = vst [vmem:[#allocation2] sm:$0xff] %v1097
        %1101 = vst [vmem:[#allocation2 + $0x8] sm:$0xff] %v1098
        %1102 = vst [vmem:[#allocation2 + $0x10] sm:$0xff] %v1099
        %v1103 = vpack.c.bf16 %v1078, %v1077
        %v1104 = vpack.c.bf16 %v1076, %v1075
        %v1105 = vpack.c.bf16 %v1074, %v1073
        %1106 = vst [vmem:[#allocation2 + $0x18] sm:$0xff] %v1103
        %1107 = vst [vmem:[#allocation2 + $0x20] sm:$0xff] %v1104
        %1108 = vst [vmem:[#allocation2 + $0x28] sm:$0xff] %v1105
        %1109 = vrot.lane.b32.xlu0 %v1077, 127
        %v1110 = vpop.permute.xlu0 %1109
        %1111 = vrot.lane.b32.xlu0 %v1078, 127
        %v1112 = vpop.permute.xlu0 %1111
        %1113 = vrot.lane.b32.xlu0 %v1075, 127
        %v1114 = vpop.permute.xlu0 %1113
        %1115 = vrot.lane.b32.xlu0 %v1076, 127
        %v1116 = vpop.permute.xlu0 %1115
        %1117 = vrot.lane.b32.xlu0 %v1073, 127
        %v1118 = vpop.permute.xlu0 %1117
        %1119 = vrot.lane.b32.xlu0 %v1074, 127
        %v1120 = vpop.permute.xlu0 %1119
        %v1121 = vsel %vm358, %v1114, %v1118
        %v1122 = vsel %vm358, %v1116, %v1120
        %v1123 = vsel %vm358, %v1110, %v1114
        %v1124 = vsel %vm358, %v1112, %v1116
        %v1125 = vsel %vm358, %v1118, %v1110
        %v1126 = vsel %vm358, %v1120, %v1112
        %v1127 = vpack.c.bf16 %v1124, %v1123
        %v1128 = vpack.c.bf16 %v1122, %v1121
        %v1129 = vpack.c.bf16 %v1126, %v1125
        %1130 = vst [vmem:[#allocation2 + $0x30] sm:$0xff] %v1127
        %1131 = vst [vmem:[#allocation2 + $0x38] sm:$0xff] %v1128
        %1132 = vst [vmem:[#allocation2 + $0x40] sm:$0xff] %v1129
        %1133 = vrot.lane.b32.xlu0 %v1055, 1
        %v1134 = vpop.permute.xlu0 %1133
        %1135 = vrot.lane.b32.xlu0 %v1058, 1
        %v1136 = vpop.permute.xlu0 %1135
        %1137 = vrot.lane.b32.xlu0 %v1056, 1
        %v1138 = vpop.permute.xlu0 %1137
        %1139 = vrot.lane.b32.xlu0 %v1059, 1
        %v1140 = vpop.permute.xlu0 %1139
        %1141 = vrot.lane.b32.xlu0 %v1057, 1
        %v1142 = vpop.permute.xlu0 %1141
        %1143 = vrot.lane.b32.xlu0 %v1060, 1
        %v1144 = vpop.permute.xlu0 %1143
        %v1145 = vsel %vm327, %v1138, %v1142
        %v1146 = vsel %vm327, %v1140, %v1144
        %v1147 = vsel %vm327, %v1134, %v1138
        %v1148 = vsel %vm327, %v1136, %v1140
        %v1149 = vsel %vm327, %v1142, %v1134
        %v1150 = vsel %vm327, %v1144, %v1136
        %v1151 = vpack.c.bf16 %v1150, %v1149
        %v1152 = vpack.c.bf16 %v1148, %v1147
        %v1153 = vpack.c.bf16 %v1146, %v1145
        %1154 = vst [vmem:[#allocation2 + $0x48] sm:$0xff] %v1151
        %1155 = vst [vmem:[#allocation2 + $0x50] sm:$0xff] %v1152
        %1156 = vst [vmem:[#allocation2 + $0x58] sm:$0xff] %v1153
        %v1157 = vpack.c.bf16 %v1058, %v1055
        %v1158 = vpack.c.bf16 %v1059, %v1056
        %v1159 = vpack.c.bf16 %v1060, %v1057
        %1160 = vst [vmem:[#allocation2 + $0x60] sm:$0xff] %v1157
        %1161 = vst [vmem:[#allocation2 + $0x68] sm:$0xff] %v1158
        %1162 = vst [vmem:[#allocation2 + $0x70] sm:$0xff] %v1159
        %1163 = vrot.lane.b32.xlu0 %v1055, 127
        %v1164 = vpop.permute.xlu0 %1163
        %1165 = vrot.lane.b32.xlu0 %v1058, 127
        %v1166 = vpop.permute.xlu0 %1165
        %1167 = vrot.lane.b32.xlu0 %v1056, 127
        %v1168 = vpop.permute.xlu0 %1167
        %1169 = vrot.lane.b32.xlu0 %v1059, 127
        %v1170 = vpop.permute.xlu0 %1169
        %1171 = vrot.lane.b32.xlu0 %v1057, 127
        %v1172 = vpop.permute.xlu0 %1171
        %1173 = vrot.lane.b32.xlu0 %v1060, 127
        %v1174 = vpop.permute.xlu0 %1173
        %v1175 = vsel %vm358, %v1168, %v1172
        %v1176 = vsel %vm358, %v1170, %v1174
        %v1177 = vsel %vm358, %v1164, %v1168
        %v1178 = vsel %vm358, %v1166, %v1170
        %v1179 = vsel %vm358, %v1172, %v1164
        %v1180 = vsel %vm358, %v1174, %v1166
        %v1181 = vpack.c.bf16 %v1178, %v1177
        %v1182 = vpack.c.bf16 %v1176, %v1175
        %v1183 = vpack.c.bf16 %v1180, %v1179
        %1184 = vst [vmem:[#allocation2 + $0x78] sm:$0xff] %v1181
        %1185 = vst [vmem:[#allocation2 + $0x80] sm:$0xff] %v1182
        %1186 = vst [vmem:[#allocation2 + $0x88] sm:$0xff] %v1183
        %1187 = vrot.lane.b32.xlu0 %v1055, 110
        %v1188 = vpop.permute.xlu0 %1187
        %1189 = vrot.lane.b32.xlu0 %v1058, 110
        %v1190 = vpop.permute.xlu0 %1189
        %1191 = vrot.lane.b32.xlu0 %v1056, 110
        %v1192 = vpop.permute.xlu0 %1191
        %1193 = vrot.lane.b32.xlu0 %v1059, 110
        %v1194 = vpop.permute.xlu0 %1193
        %1195 = vrot.lane.b32.xlu0 %v1057, 110
        %v1196 = vpop.permute.xlu0 %1195
        %1197 = vrot.lane.b32.xlu0 %v1060, 110
        %v1198 = vpop.permute.xlu0 %1197
        %v1199 = vsel %vm437, %v1192, %v1196
        %v1200 = vsel %vm437, %v1194, %v1198
        %v1201 = vsel %vm437, %v1188, %v1192
        %v1202 = vsel %vm437, %v1190, %v1194
        %v1203 = vsel %vm437, %v1196, %v1188
        %v1204 = vsel %vm437, %v1198, %v1190
        %1205 = vrot.lane.b32.xlu0 %v1201, 1
        %v1206 = vpop.permute.xlu0 %1205
        %1207 = vrot.lane.b32.xlu0 %v1202, 1
        %v1208 = vpop.permute.xlu0 %1207
        %1209 = vrot.lane.b32.xlu0 %v1199, 1
        %v1210 = vpop.permute.xlu0 %1209
        %1211 = vrot.lane.b32.xlu0 %v1200, 1
        %v1212 = vpop.permute.xlu0 %1211
        %1213 = vrot.lane.b32.xlu0 %v1203, 1
        %v1214 = vpop.permute.xlu0 %1213
        %1215 = vrot.lane.b32.xlu0 %v1204, 1
        %v1216 = vpop.permute.xlu0 %1215
        %v1217 = vsel %vm327, %v1210, %v1214
        %v1218 = vsel %vm327, %v1212, %v1216
        %v1219 = vsel %vm327, %v1206, %v1210
        %v1220 = vsel %vm327, %v1208, %v1212
        %v1221 = vsel %vm327, %v1214, %v1206
        %v1222 = vsel %vm327, %v1216, %v1208
        %v1223 = vpack.c.bf16 %v1222, %v1221
        %v1224 = vpack.c.bf16 %v1220, %v1219
        %v1225 = vpack.c.bf16 %v1218, %v1217
        %1226 = vst [vmem:[#allocation2 + $0x90] sm:$0xff] %v1223
        %1227 = vst [vmem:[#allocation2 + $0x98] sm:$0xff] %v1224
        %1228 = vst [vmem:[#allocation2 + $0xa0] sm:$0xff] %v1225
        %v1229 = vpack.c.bf16 %v1202, %v1201
        %v1230 = vpack.c.bf16 %v1200, %v1199
        %v1231 = vpack.c.bf16 %v1204, %v1203
        %1232 = vst [vmem:[#allocation2 + $0xa8] sm:$0xff] %v1229
        %1233 = vst [vmem:[#allocation2 + $0xb0] sm:$0xff] %v1230
        %1234 = vst [vmem:[#allocation2 + $0xb8] sm:$0xff] %v1231
        %1235 = vrot.lane.b32.xlu0 %v1201, 127
        %v1236 = vpop.permute.xlu0 %1235
        %1237 = vrot.lane.b32.xlu0 %v1202, 127
        %v1238 = vpop.permute.xlu0 %1237
        %1239 = vrot.lane.b32.xlu0 %v1199, 127
        %v1240 = vpop.permute.xlu0 %1239
        %1241 = vrot.lane.b32.xlu0 %v1200, 127
        %v1242 = vpop.permute.xlu0 %1241
        %1243 = vrot.lane.b32.xlu0 %v1203, 127
        %v1244 = vpop.permute.xlu0 %1243
        %1245 = vrot.lane.b32.xlu0 %v1204, 127
        %v1246 = vpop.permute.xlu0 %1245
        %v1247 = vsel %vm358, %v1240, %v1244
        %v1248 = vsel %vm358, %v1242, %v1246
        %v1249 = vsel %vm358, %v1236, %v1240
        %v1250 = vsel %vm358, %v1238, %v1242
        %v1251 = vsel %vm358, %v1244, %v1236
        %v1252 = vsel %vm358, %v1246, %v1238
        %v1253 = vpack.c.bf16 %v1250, %v1249
        %v1254 = vpack.c.bf16 %v1248, %v1247
        %v1255 = vpack.c.bf16 %v1252, %v1251
        %1256 = vst [vmem:[#allocation2 + $0xc0] sm:$0xff] %v1253
        %1257 = vst [vmem:[#allocation2 + $0xc8] sm:$0xff] %v1254
        %1258 = vst [vmem:[#allocation2 + $0xd0] sm:$0xff] %v1255
        %v1259 = vld [vmem:[#allocation8] sm:$0xff]
        %v1260 = vld [vmem:[#allocation8 + $0x8] sm:$0xff]
        %v1261 = vld [vmem:[#allocation2] sm:$0xff]
        %v1262 = vld [vmem:[#allocation2 + $0x8] sm:$0xff]
        %v1263 = vld [vmem:[#allocation2 + $0x10] sm:$0xff]
        %v1264 = vld [vmem:[#allocation2 + $0x18] sm:$0xff]
        %v1265 = vld [vmem:[#allocation2 + $0x20] sm:$0xff]
        %v1266 = vld [vmem:[#allocation2 + $0x28] sm:$0xff]
        %v1267 = vld [vmem:[#allocation2 + $0x30] sm:$0xff]
        %v1268 = vld [vmem:[#allocation2 + $0x38] sm:$0xff]
        %v1269 = vld [vmem:[#allocation2 + $0x40] sm:$0xff]
        %v1270 = vld [vmem:[#allocation2 + $0x48] sm:$0xff]
        %v1271 = vld [vmem:[#allocation2 + $0x50] sm:$0xff]
        %v1272 = vld [vmem:[#allocation2 + $0x58] sm:$0xff]
        %v1273 = vld [vmem:[#allocation2 + $0x60] sm:$0xff]
        %v1274 = vld [vmem:[#allocation2 + $0x68] sm:$0xff]
        %v1275 = vld [vmem:[#allocation2 + $0x70] sm:$0xff]
        %v1276 = vld [vmem:[#allocation2 + $0x78] sm:$0xff]
        %v1277 = vld [vmem:[#allocation2 + $0x80] sm:$0xff]
        %v1278 = vld [vmem:[#allocation2 + $0x88] sm:$0xff]
        %v1279 = vld [vmem:[#allocation2 + $0x90] sm:$0xff]
        %v1280 = vld [vmem:[#allocation2 + $0x98] sm:$0xff]
        %v1281 = vld [vmem:[#allocation2 + $0xa0] sm:$0xff]
        %v1282 = vld [vmem:[#allocation2 + $0xa8] sm:$0xff]
        %v1283 = vld [vmem:[#allocation2 + $0xb0] sm:$0xff]
        %v1284 = vld [vmem:[#allocation2 + $0xb8] sm:$0xff]
        %v1285 = vld [vmem:[#allocation2 + $0xc0] sm:$0xff]
        %v1286 = vld [vmem:[#allocation2 + $0xc8] sm:$0xff]
        %v1287 = vld [vmem:[#allocation2 + $0xd0] sm:$0xff]
        %v1290 = vunpack.c.l.b16 %v1259
        %v1291 = vunpack.c.h.b16 %v1259
        %v1292 = vunpack.c.l.b16 %v1260
        %v1293 = vunpack.c.h.b16 %v1260
        %v1294 = vpack.c.b16 %v1292, %v1290
        %v1295 = vpack.c.b16 %v1293, %v1291
        %v1298 = vsel %vm536, %v1295, 0
        %1300 = vmatprep.subr.bf16.mxu0 %v1262
        %1301 = vmatpush1.bf16.msra.mxu0 %v1261
        %1302 = vmatprep.subr.bf16.mxu0 %v1265
        %1303 = vmatpush1.bf16.msra.mxu0 %v1264
        %1304 = vmatprep.subr.bf16.mxu0 %v1268
        %1305 = vmatpush1.bf16.msra.mxu0 %v1267
        %1306 = vmatprep.subr.bf16.mxu0 %v1271
        %1307 = vmatpush1.bf16.msra.mxu0 %v1270
        %1308 = vmatprep.subr.bf16.mxu0 %v1274
        %1309 = vmatpush1.bf16.msra.mxu0 %v1273
        %1310 = vmatprep.subr.bf16.mxu0 %v1277
        %1311 = vmatpush1.bf16.msra.mxu0 %v1276
        %1312 = vmatprep.subr.bf16.mxu0 %v1280
        %1313 = vmatpush1.bf16.msra.mxu0 %v1279
        %1314 = vmatprep.subr.bf16.mxu0 %v1283
        %1315 = vmatpush1.bf16.msra.mxu0 %v1282
        %1316 = vmatprep.subr.bf16.mxu0 %v1286
        %1317 = vmatpush1.bf16.msra.mxu0 %v1285
        %1318 = vmatprep.subr.bf16.mxu0 0
        %1319 = vmatpush1.bf16.msra.mxu0 0
        %1320 = vmatprep.subr.bf16.mxu0 0
        %1321 = vmatpush1.bf16.msra.mxu0 0
        %1322 = vmatprep.subr.bf16.mxu0 0
        %1323 = vmatpush1.bf16.msra.mxu0 0
        %1324 = vmatprep.subr.bf16.mxu0 0
        %1325 = vmatpush1.bf16.msra.mxu0 0
        %1326 = vmatprep.subr.bf16.mxu0 0
        %1327 = vmatpush1.bf16.msra.mxu0 0
        %1328 = vmatprep.subr.bf16.mxu0 0
        %1329 = vmatpush1.bf16.msra.mxu0 0
        %1330 = vmatprep.subr.bf16.mxu0 0
        %1331 = vmatpush1.bf16.msra.mxu0 0
        %1332 = vmatprep.mubr.bf16.mxu0 %v1298
        %1333 = vmatmul.mubr.bf16.gmra.mrb[0].mxu0 %v1294
        %v1334 = vpop.f32.mrb[0].mxu0
        %v1335 = vadd.f32 0.0, %v1334
        %v1336 = vpop.f32.mrb[0].mxu0
        %v1337 = vadd.f32 0.0, %v1336
        %v1338 = vpop.f32.mrb[0].mxu0
        %v1339 = vadd.f32 0.0, %v1338
        %v1340 = vpop.f32.mrb[0].mxu0
        %v1341 = vadd.f32 0.0, %v1340
        %1342 = vdwg.mxu0
        %1343 = vmatprep.subr.bf16.mxu0 0
        %1344 = vmatpush1.bf16.msra.mxu0 %v1263
        %1345 = vmatprep.subr.bf16.mxu0 0
        %1346 = vmatpush1.bf16.msra.mxu0 %v1266
        %1347 = vmatprep.subr.bf16.mxu0 0
        %1348 = vmatpush1.bf16.msra.mxu0 %v1269
        %1349 = vmatprep.subr.bf16.mxu0 0
        %1350 = vmatpush1.bf16.msra.mxu0 %v1272
        %1351 = vmatprep.subr.bf16.mxu0 0
        %1352 = vmatpush1.bf16.msra.mxu0 %v1275
        %1353 = vmatprep.subr.bf16.mxu0 0
        %1354 = vmatpush1.bf16.msra.mxu0 %v1278
        %1355 = vmatprep.subr.bf16.mxu0 0
        %1356 = vmatpush1.bf16.msra.mxu0 %v1281
        %1357 = vmatprep.subr.bf16.mxu0 0
        %1358 = vmatpush1.bf16.msra.mxu0 %v1284
        %1359 = vmatprep.subr.bf16.mxu0 0
        %1360 = vmatpush1.bf16.msra.mxu0 %v1287
        %1361 = vmatprep.subr.bf16.mxu0 0
        %1362 = vmatpush1.bf16.msra.mxu0 0
        %1363 = vmatprep.subr.bf16.mxu0 0
        %1364 = vmatpush1.bf16.msra.mxu0 0
        %1365 = vmatprep.subr.bf16.mxu0 0
        %1366 = vmatpush1.bf16.msra.mxu0 0
        %1367 = vmatprep.subr.bf16.mxu0 0
        %1368 = vmatpush1.bf16.msra.mxu0 0
        %1369 = vmatprep.subr.bf16.mxu0 0
        %1370 = vmatpush1.bf16.msra.mxu0 0
        %1371 = vmatprep.subr.bf16.mxu0 0
        %1372 = vmatpush1.bf16.msra.mxu0 0
        %1373 = vmatprep.subr.bf16.mxu0 0
        %1374 = vmatpush1.bf16.msra.mxu0 0
        %1375 = vmatprep.mubr.bf16.mxu0 %v1298
        %1376 = vmatmul.mubr.bf16.gmra.mrb[0].mxu0 %v1294
        %v1377 = vpop.f32.mrb[0].mxu0
        %v1378 = vadd.f32 0.0, %v1377
        %v1379 = vpop.f32.mrb[0].mxu0
        %v1380 = vpop.f32.mrb[0].mxu0
        %v1381 = vadd.f32 0.0, %v1380
        %v1382 = vpop.f32.mrb[0].mxu0
        %1383 = vdwg.mxu0
        %v1384 = vpack.c.bf16 %v1339, %v1335
        %v1385 = vpack.c.bf16 %v1341, %v1337
        %v1386 = vpack.c.bf16 %v1381, %v1378
        %v1387 = vld [vmem:[#allocation9] sm:$0xf]
        %v1388 = vld [vmem:[#allocation9 + $0x4] sm:$0xf]
        %v1389 = vld [vmem:[#allocation9 + $0x8] sm:$0xf]
        %v1390 = vld [vmem:[#allocation9 + $0xc] sm:$0xf]
        %v1391 = vld [vmem:[#allocation9 + $0x10] sm:$0xf]
        %v1392 = vld [vmem:[#allocation9 + $0x14] sm:$0xf]
        %v1393 = vld [vmem:[#allocation9 + $0x18] sm:$0xf]
        %v1394 = vld [vmem:[#allocation9 + $0x1c] sm:$0xf]
        %v1395 = vld [vmem:[#allocation9 + $0x20] sm:$0xf]
        %v1396 = vld [vmem:[#allocation9 + $0x24] sm:$0xf]
        %v1397 = vld [vmem:[#allocation9 + $0x28] sm:$0xf]
        %v1398 = vld [vmem:[#allocation9 + $0x2c] sm:$0xf]
        %v1399 = vld [vmem:[#allocation9 + $0x30] sm:$0xf]
        %v1400 = vld [vmem:[#allocation9 + $0x34] sm:$0xf]
        %v1401 = vld [vmem:[#allocation9 + $0x38] sm:$0xf]
        %v1402 = vld [vmem:[#allocation9 + $0x3c] sm:$0xf]
        %v1403 = vld [vmem:[#allocation9 + $0x40] sm:$0xf]
        %v1404 = vld [vmem:[#allocation9 + $0x44] sm:$0xf]
        %v1405 = vld [vmem:[#allocation9 + $0x48] sm:$0xf]
        %v1406 = vld [vmem:[#allocation9 + $0x4c] sm:$0xf]
        %v1407 = vld [vmem:[#allocation9 + $0x50] sm:$0xf]
        %v1408 = vld [vmem:[#allocation9 + $0x54] sm:$0xf]
        %v1409 = vld [vmem:[#allocation9 + $0x58] sm:$0xf]
        %v1410 = vld [vmem:[#allocation9 + $0x5c] sm:$0xf]
        %v1411 = vld [vmem:[#allocation9 + $0x60] sm:$0xf]
        %v1412 = vld [vmem:[#allocation9 + $0x64] sm:$0xf]
        %v1413 = vld [vmem:[#allocation9 + $0x68] sm:$0xf]
        %v1414 = vld [vmem:[#allocation9 + $0x6c] sm:$0xf]
        %v1415 = vld [vmem:[#allocation9 + $0x70] sm:$0xf]
        %v1416 = vld [vmem:[#allocation9 + $0x74] sm:$0xf]
        %v1417 = vld [vmem:[#allocation9 + $0x78] sm:$0xf]
        %v1418 = vld [vmem:[#allocation9 + $0x7c] sm:$0xf]
        %v1419 = vld [vmem:[#allocation9 + $0x80] sm:$0xf]
        %v1420 = vld [vmem:[#allocation9 + $0x84] sm:$0xf]
        %v1421 = vld [vmem:[#allocation9 + $0x88] sm:$0xf]
        %v1422 = vld [vmem:[#allocation9 + $0x8c] sm:$0xf]
        %v1423 = vld [vmem:[#allocation9 + $0x90] sm:$0xf]
        %v1424 = vld [vmem:[#allocation9 + $0x94] sm:$0xf]
        %v1425 = vld [vmem:[#allocation9 + $0x98] sm:$0xf]
        %v1426 = vld [vmem:[#allocation9 + $0x9c] sm:$0xf]
        %v1427 = vld [vmem:[#allocation9 + $0xa0] sm:$0xf]
        %v1428 = vld [vmem:[#allocation9 + $0xa4] sm:$0xf]
        %v1429 = vld [vmem:[#allocation9 + $0xa8] sm:$0xf]
        %v1430 = vld [vmem:[#allocation9 + $0xac] sm:$0xf]
        %v1431 = vld [vmem:[#allocation9 + $0xb0] sm:$0xf]
        %v1432 = vld [vmem:[#allocation9 + $0xb4] sm:$0xf]
        %v1433 = vld [vmem:[#allocation9 + $0xb8] sm:$0xf]
        %v1434 = vld [vmem:[#allocation9 + $0xbc] sm:$0xf]
        %v1483 = vunpack.c.l.b16 %v1387
        %v1484 = vunpack.c.l.b16 %v1388
        %v1485 = vunpack.c.l.b16 %v1389
        %v1486 = vunpack.c.l.b16 %v1390
        %v1487 = vunpack.c.l.b16 %v1391
        %v1488 = vunpack.c.l.b16 %v1392
        %v1489 = vunpack.c.l.b16 %v1393
        %v1490 = vunpack.c.l.b16 %v1394
        %v1491 = vunpack.c.l.b16 %v1395
        %v1492 = vunpack.c.l.b16 %v1396
        %v1493 = vunpack.c.l.b16 %v1397
        %v1494 = vunpack.c.l.b16 %v1398
        %v1495 = vunpack.c.l.b16 %v1399
        %v1496 = vunpack.c.l.b16 %v1400
        %v1497 = vunpack.c.l.b16 %v1401
        %v1498 = vunpack.c.l.b16 %v1402
        %v1499 = vunpack.c.l.b16 %v1403
        %v1500 = vunpack.c.l.b16 %v1404
        %v1501 = vunpack.c.l.b16 %v1405
        %v1502 = vunpack.c.l.b16 %v1406
        %v1503 = vunpack.c.l.b16 %v1407
        %v1504 = vunpack.c.l.b16 %v1408
        %v1505 = vunpack.c.l.b16 %v1409
        %v1506 = vunpack.c.l.b16 %v1410
        %v1507 = vunpack.c.l.b16 %v1411
        %v1508 = vunpack.c.l.b16 %v1412
        %v1509 = vunpack.c.l.b16 %v1413
        %v1510 = vunpack.c.l.b16 %v1414
        %v1511 = vunpack.c.l.b16 %v1415
        %v1512 = vunpack.c.l.b16 %v1416
        %v1513 = vunpack.c.l.b16 %v1417
        %v1514 = vunpack.c.l.b16 %v1418
        %v1515 = vunpack.c.l.b16 %v1419
        %v1516 = vunpack.c.l.b16 %v1420
        %v1517 = vunpack.c.l.b16 %v1421
        %v1518 = vunpack.c.l.b16 %v1422
        %v1519 = vunpack.c.l.b16 %v1423
        %v1520 = vunpack.c.l.b16 %v1424
        %v1521 = vunpack.c.l.b16 %v1425
        %v1522 = vunpack.c.l.b16 %v1426
        %v1523 = vunpack.c.l.b16 %v1427
        %v1524 = vunpack.c.l.b16 %v1428
        %v1525 = vunpack.c.l.b16 %v1429
        %v1526 = vunpack.c.l.b16 %v1430
        %v1527 = vunpack.c.l.b16 %v1431
        %v1528 = vunpack.c.l.b16 %v1432
        %v1529 = vunpack.c.l.b16 %v1433
        %v1530 = vunpack.c.l.b16 %v1434
        %v1531 = vpack.c.b16 %v1484, %v1483
        %v1532 = vpack.c.b16 %v1486, %v1485
        %v1533 = vpack.c.b16 %v1488, %v1487
        %v1534 = vpack.c.b16 %v1490, %v1489
        %v1535 = vpack.c.b16 %v1492, %v1491
        %v1536 = vpack.c.b16 %v1494, %v1493
        %v1537 = vpack.c.b16 %v1496, %v1495
        %v1538 = vpack.c.b16 %v1498, %v1497
        %v1539 = vpack.c.b16 %v1500, %v1499
        %v1540 = vpack.c.b16 %v1502, %v1501
        %v1541 = vpack.c.b16 %v1504, %v1503
        %v1542 = vpack.c.b16 %v1506, %v1505
        %v1543 = vpack.c.b16 %v1508, %v1507
        %v1544 = vpack.c.b16 %v1510, %v1509
        %v1545 = vpack.c.b16 %v1512, %v1511
        %v1546 = vpack.c.b16 %v1514, %v1513
        %v1547 = vpack.c.b16 %v1516, %v1515
        %v1548 = vpack.c.b16 %v1518, %v1517
        %v1549 = vpack.c.b16 %v1520, %v1519
        %v1550 = vpack.c.b16 %v1522, %v1521
        %v1551 = vpack.c.b16 %v1524, %v1523
        %v1552 = vpack.c.b16 %v1526, %v1525
        %v1553 = vpack.c.b16 %v1528, %v1527
        %v1554 = vpack.c.b16 %v1530, %v1529
        %1579 = vmatprep.subr.bf16.mxu0 0
        %1580 = vmatpush1.bf16.msra.mxu0 %v1531
        %1581 = vmatprep.subr.bf16.mxu0 0
        %1582 = vmatpush1.bf16.msra.mxu0 %v1532
        %1583 = vmatprep.subr.bf16.mxu0 0
        %1584 = vmatpush1.bf16.msra.mxu0 %v1533
        %1585 = vmatprep.subr.bf16.mxu0 0
        %1586 = vmatpush1.bf16.msra.mxu0 %v1534
        %1587 = vmatprep.subr.bf16.mxu0 0
        %1588 = vmatpush1.bf16.msra.mxu0 %v1535
        %1589 = vmatprep.subr.bf16.mxu0 0
        %1590 = vmatpush1.bf16.msra.mxu0 %v1536
        %1591 = vmatprep.subr.bf16.mxu0 0
        %1592 = vmatpush1.bf16.msra.mxu0 %v1537
        %1593 = vmatprep.subr.bf16.mxu0 0
        %1594 = vmatpush1.bf16.msra.mxu0 %v1538
        %1595 = vmatprep.subr.bf16.mxu0 0
        %1596 = vmatpush1.bf16.msra.mxu0 %v1539
        %1597 = vmatprep.subr.bf16.mxu0 0
        %1598 = vmatpush1.bf16.msra.mxu0 %v1540
        %1599 = vmatprep.subr.bf16.mxu0 0
        %1600 = vmatpush1.bf16.msra.mxu0 %v1541
        %1601 = vmatprep.subr.bf16.mxu0 0
        %1602 = vmatpush1.bf16.msra.mxu0 %v1542
        %1603 = vmatprep.subr.bf16.mxu0 0
        %1604 = vmatpush1.bf16.msra.mxu0 %v1543
        %1605 = vmatprep.subr.bf16.mxu0 0
        %1606 = vmatpush1.bf16.msra.mxu0 %v1544
        %1607 = vmatprep.subr.bf16.mxu0 0
        %1608 = vmatpush1.bf16.msra.mxu0 %v1545
        %1609 = vmatprep.subr.bf16.mxu0 0
        %1610 = vmatpush1.bf16.msra.mxu0 %v1546
        %1611 = vmatprep.mubr.bf16.mxu0 %v1385
        %1612 = vmatmul.mubr.bf16.gmra.mrb[0].mxu0 %v1384
        %v1613 = vpop.f32.mrb[0].mxu0
        %v1614 = vadd.f32 0.0, %v1613
        %v1615 = vpop.f32.mrb[0].mxu0
        %v1616 = vpop.f32.mrb[0].mxu0
        %v1617 = vadd.f32 0.0, %v1616
        %v1618 = vpop.f32.mrb[0].mxu0
        %1619 = vdwg.mxu0
        %1620 = vmatprep.subr.bf16.mxu0 0
        %1621 = vmatpush1.bf16.msra.mxu0 %v1547
        %1622 = vmatprep.subr.bf16.mxu0 0
        %1623 = vmatpush1.bf16.msra.mxu0 %v1548
        %1624 = vmatprep.subr.bf16.mxu0 0
        %1625 = vmatpush1.bf16.msra.mxu0 %v1549
        %1626 = vmatprep.subr.bf16.mxu0 0
        %1627 = vmatpush1.bf16.msra.mxu0 %v1550
        %1628 = vmatprep.subr.bf16.mxu0 0
        %1629 = vmatpush1.bf16.msra.mxu0 %v1551
        %1630 = vmatprep.subr.bf16.mxu0 0
        %1631 = vmatpush1.bf16.msra.mxu0 %v1552
        %1632 = vmatprep.subr.bf16.mxu0 0
        %1633 = vmatpush1.bf16.msra.mxu0 %v1553
        %1634 = vmatprep.subr.bf16.mxu0 0
        %1635 = vmatpush1.bf16.msra.mxu0 %v1554
        %1636 = vmatprep.subr.bf16.mxu0 0
        %1637 = vmatpush1.bf16.msra.mxu0 0
        %1638 = vmatprep.subr.bf16.mxu0 0
        %1639 = vmatpush1.bf16.msra.mxu0 0
        %1640 = vmatprep.subr.bf16.mxu0 0
        %1641 = vmatpush1.bf16.msra.mxu0 0
        %1642 = vmatprep.subr.bf16.mxu0 0
        %1643 = vmatpush1.bf16.msra.mxu0 0
        %1644 = vmatprep.subr.bf16.mxu0 0
        %1645 = vmatpush1.bf16.msra.mxu0 0
        %1646 = vmatprep.subr.bf16.mxu0 0
        %1647 = vmatpush1.bf16.msra.mxu0 0
        %1648 = vmatprep.subr.bf16.mxu0 0
        %1649 = vmatpush1.bf16.msra.mxu0 0
        %1650 = vmatprep.subr.bf16.mxu0 0
        %1651 = vmatpush1.bf16.msra.mxu0 0
        %1652 = vmatprep.mubr.bf16.mxu0 0
        %1653 = vmatmul.mubr.bf16.gmra.mrb[0].mxu0 %v1386
        %v1654 = vpop.f32.mrb[0].mxu0
        %v1655 = vadd.f32 %v1614, %v1654
        %v1656 = vpop.f32.mrb[0].mxu0
        %v1657 = vpop.f32.mrb[0].mxu0
        %v1658 = vadd.f32 %v1617, %v1657
        %v1659 = vpop.f32.mrb[0].mxu0
        %1660 = vdwg.mxu0
        %v1661 = vmul.f32 %v1655, 0.00390625
        %v1662 = vmul.f32 %v1658, 0.00390625
        %1664 = vset.pattern.permute.xlu0 0
        %1665 = vperm.xlu0 %1664, %v1661
        %v1666 = vpop.permute.xlu0 %1665
        %1669 = vset.pattern.permute.xlu0 0
        %1670 = vperm.xlu0 %1669, %v1662
        %v1671 = vpop.permute.xlu0 %1670
        %v1673 = vsub.f32 %v1335, %v1666
        %v1674 = vsub.f32 %v1337, %v1666
        %v1675 = vsub.f32 %v1378, %v1666
        %v1676 = vsub.f32 %v1339, %v1671
        %v1677 = vsub.f32 %v1341, %v1671
        %v1678 = vsub.f32 %v1381, %v1671
        %v1679 = vmul.f32 %v1673, %v1673
        %v1680 = vmul.f32 %v1674, %v1674
        %v1681 = vmul.f32 %v1675, %v1675
        %v1682 = vmul.f32 %v1676, %v1676
        %v1683 = vmul.f32 %v1677, %v1677
        %v1684 = vmul.f32 %v1678, %v1678
        %v1685 = vpack.c.bf16 %v1682, %v1679
        %v1686 = vpack.c.bf16 %v1683, %v1680
        %v1687 = vpack.c.bf16 %v1684, %v1681
        %1688 = vmatprep.subr.bf16.mxu0 0
        %1689 = vmatpush1.bf16.msra.mxu0 %v1531
        %1690 = vmatprep.subr.bf16.mxu0 0
        %1691 = vmatpush1.bf16.msra.mxu0 %v1532
        %1692 = vmatprep.subr.bf16.mxu0 0
        %1693 = vmatpush1.bf16.msra.mxu0 %v1533
        %1694 = vmatprep.subr.bf16.mxu0 0
        %1695 = vmatpush1.bf16.msra.mxu0 %v1534
        %1696 = vmatprep.subr.bf16.mxu0 0
        %1697 = vmatpush1.bf16.msra.mxu0 %v1535
        %1698 = vmatprep.subr.bf16.mxu0 0
        %1699 = vmatpush1.bf16.msra.mxu0 %v1536
        %1700 = vmatprep.subr.bf16.mxu0 0
        %1701 = vmatpush1.bf16.msra.mxu0 %v1537
        %1702 = vmatprep.subr.bf16.mxu0 0
        %1703 = vmatpush1.bf16.msra.mxu0 %v1538
        %1704 = vmatprep.subr.bf16.mxu0 0
        %1705 = vmatpush1.bf16.msra.mxu0 %v1539
        %1706 = vmatprep.subr.bf16.mxu0 0
        %1707 = vmatpush1.bf16.msra.mxu0 %v1540
        %1708 = vmatprep.subr.bf16.mxu0 0
        %1709 = vmatpush1.bf16.msra.mxu0 %v1541
        %1710 = vmatprep.subr.bf16.mxu0 0
        %1711 = vmatpush1.bf16.msra.mxu0 %v1542
        %1712 = vmatprep.subr.bf16.mxu0 0
        %1713 = vmatpush1.bf16.msra.mxu0 %v1543
        %1714 = vmatprep.subr.bf16.mxu0 0
        %1715 = vmatpush1.bf16.msra.mxu0 %v1544
        %1716 = vmatprep.subr.bf16.mxu0 0
        %1717 = vmatpush1.bf16.msra.mxu0 %v1545
        %1718 = vmatprep.subr.bf16.mxu0 0
        %1719 = vmatpush1.bf16.msra.mxu0 %v1546
        %1720 = vmatprep.mubr.bf16.mxu0 %v1686
        %1721 = vmatmul.mubr.bf16.gmra.mrb[0].mxu0 %v1685
        %v1722 = vpop.f32.mrb[0].mxu0
        %v1723 = vadd.f32 0.0, %v1722
        %v1724 = vpop.f32.mrb[0].mxu0
        %v1725 = vpop.f32.mrb[0].mxu0
        %v1726 = vpop.f32.mrb[0].mxu0
        %1727 = vdwg.mxu0
        %1728 = vmatprep.subr.bf16.mxu0 0
        %1729 = vmatpush1.bf16.msra.mxu0 %v1547
        %1730 = vmatprep.subr.bf16.mxu0 0
        %1731 = vmatpush1.bf16.msra.mxu0 %v1548
        %1732 = vmatprep.subr.bf16.mxu0 0
        %1733 = vmatpush1.bf16.msra.mxu0 %v1549
        %1734 = vmatprep.subr.bf16.mxu0 0
        %1735 = vmatpush1.bf16.msra.mxu0 %v1550
        %1736 = vmatprep.subr.bf16.mxu0 0
        %1737 = vmatpush1.bf16.msra.mxu0 %v1551
        %1738 = vmatprep.subr.bf16.mxu0 0
        %1739 = vmatpush1.bf16.msra.mxu0 %v1552
        %1740 = vmatprep.subr.bf16.mxu0 0
        %1741 = vmatpush1.bf16.msra.mxu0 %v1553
        %1742 = vmatprep.subr.bf16.mxu0 0
        %1743 = vmatpush1.bf16.msra.mxu0 %v1554
        %1744 = vmatprep.subr.bf16.mxu0 0
        %1745 = vmatpush1.bf16.msra.mxu0 0
        %1746 = vmatprep.subr.bf16.mxu0 0
        %1747 = vmatpush1.bf16.msra.mxu0 0
        %1748 = vmatprep.subr.bf16.mxu0 0
        %1749 = vmatpush1.bf16.msra.mxu0 0
        %1750 = vmatprep.subr.bf16.mxu0 0
        %1751 = vmatpush1.bf16.msra.mxu0 0
        %1752 = vmatprep.subr.bf16.mxu0 0
        %1753 = vmatpush1.bf16.msra.mxu0 0
        %1754 = vmatprep.subr.bf16.mxu0 0
        %1755 = vmatpush1.bf16.msra.mxu0 0
        %1756 = vmatprep.subr.bf16.mxu0 0
        %1757 = vmatpush1.bf16.msra.mxu0 0
        %1758 = vmatprep.subr.bf16.mxu0 0
        %1759 = vmatpush1.bf16.msra.mxu0 0
        %1760 = vmatprep.mubr.bf16.mxu0 0
        %1761 = vmatmul.mubr.bf16.gmra.mrb[0].mxu0 %v1687
        %v1762 = vpop.f32.mrb[0].mxu0
        %v1763 = vadd.f32 %v1723, %v1762
        %v1764 = vpop.f32.mrb[0].mxu0
        %v1765 = vpop.f32.mrb[0].mxu0
        %v1766 = vpop.f32.mrb[0].mxu0
        %1767 = vdwg.mxu0
        %v1768 = vmul.f32 %v1763, 0.00390625
        %v1769 = vadd.f32 %v1768, 1e-05
        %v1770 = vrsqrt.pop %v1769
        %1772 = vset.pattern.permute.xlu0 0
        %1773 = vperm.xlu0 %1772, %v1770
        %v1774 = vpop.permute.xlu0 %1773
        %v1776 = vmul.f32 %v1673, %v1774
        %v1777 = vmul.f32 %v1674, %v1774
        %v1778 = vmul.f32 %v1675, %v1774
        %v1779 = vadd.f32 %v288, %v1776
        %v1780 = vadd.f32 %v289, %v1777
        %v1781 = vadd.f32 %v290, %v1778
        %v1784 = vcombine.low %v1779, %v1780
        %1786 = vst [vmem:[%s286] sm:$0xff] %v1784
        %1787 = vst [vmem:[%s286 + $0x8] sm:$0xf] %v1781
        %s1788 = sand.u32 %s142, 1
        %s1789 = scalar_lea.sflag [#allocation5], %s1788
        %s1790 = sand.u32 %s142, 1
        %s1791 = smul.addr %s1790, 12
        %s1792 = scalar_lea.vmem [#allocation11], %s1791
        // Predicated region
        $region57: #{tpu_custom_call.1} parent=39 // pred_check
          %p1793 = pneg %p152
        $region58: #{tpu_custom_call.1} parent=39 // pred_check_branch
          %1795 = sbr.rel (%p1793) target = $region60
        $region59: #{tpu_custom_call.1} parent=39 // pred_region
          %s1797 = ssub.s32 192, 192
          %1798 = vsyncadd %s1789, %s1797
          %s1799 = smul.addr %s24, 3
          %s1800 = smul.addr %s1799, 64
          %s1801 = scalar_lea.hbm %s5, %s1800
          %s1803 = sshll.u32 %s1792, 4
          %s1804 = int_to_ptr.vmem [resolvable:$true] %s1803
          %1806 = dma.vmem_to_hbm [thread:$0]  %s1804, 192, %s1801, %s1789
        $region60: #{tpu_custom_call.1} parent=39 // pred_fallthru
          _
      $region40: #{tpu_custom_call.1} parent=5 // pred_fallthru
        _
      %p1807 = scmp.le.s32.totalorder 2, %s19
      // Predicated region
      $region61: #{tpu_custom_call.1} parent=5 // pred_check
        %p1808 = pneg %p1807
      $region62: #{tpu_custom_call.1} parent=5 // pred_check_branch
        %1810 = sbr.rel (%p1808) target = $region64
      $region63: #{tpu_custom_call.1} parent=5 // pred_region
        %s1811 = ssub.s32 %s19, 2
        // Predicated region
        $region65: #{tpu_custom_call.1} parent=63 // pred_check
          %p1812 = pneg %p158
        $region66: #{tpu_custom_call.1} parent=63 // pred_check_branch
          %1814 = sbr.rel (%p1812) target = $region68
        $region67: #{tpu_custom_call.1} parent=63 // pred_region
          %s1815 = sand.u32 %s143, 1
          %s1816 = scalar_lea.sflag [#allocation5], %s1815
          %s1817 = sand.u32 %s143, 1
          %s1818 = smul.addr %s1817, 12
          %s1819 = scalar_lea.vmem [#allocation11], %s1818
          %1820 = dma.done %s1816, 192
        $region68: #{tpu_custom_call.1} parent=63 // pred_fallthru
          _
      $region64: #{tpu_custom_call.1} parent=5 // pred_fallthru
        _
    $region6: #{tpu_custom_call.1} parent=1 // loop_footer
      %s23 = sadd.s32 1, %s19
    $region7: #{tpu_custom_call.1} parent=1 // loop_footer_branch
      %18 = sbr.rel target = $region3
    $region8: #{tpu_custom_call.1} parent=1 // loop_exit
      _
    %1821 = vsyncpa [#allocation4], 1
    %s1822 = scalar_lea.sflag [#allocation4], 1
    %1823 = vsyncpa %s1822, 1
    %1824 = vsyncpa [#allocation7], 1
    %1825 = vsyncpa [#allocation10], 1
    %1826 = vsyncpa [#allocation5], 1
    %s1827 = scalar_lea.sflag [#allocation5], 1
    %1828 = vsyncpa %s1827, 1

</llo_original>
